<compile_context>
chip_gen: v6e
topology: v6e:2x2x1
jax: 0.10.0
libtpu: 0.0.40
codegen_flags: <defaults>
</compile_context>

<pallas_src>
import functools

import jax
import jax.numpy as jnp
from jax.experimental import pallas as pl
from jax.experimental.pallas import tpu as pltpu


def _round_up(x, m):
    return ((x + m - 1) // m) * m


# ----------------------------------------------------------------------------
# Mask construction (same semantics as the PyTorch get_mask, returns [out, in])
# ----------------------------------------------------------------------------
def get_mask(in_features, out_features, in_flow_features, mask_type=None):
    if mask_type == 'input':
        in_degrees = jnp.arange(in_features) % in_flow_features
    else:
        in_degrees = jnp.arange(in_features) % (in_flow_features - 1)
    if mask_type == 'output':
        out_degrees = jnp.arange(out_features) % in_flow_features - 1
    else:
        out_degrees = jnp.arange(out_features) % (in_flow_features - 1)
    return (out_degrees[:, None] >= in_degrees[None, :]).astype(jnp.float32)


# ----------------------------------------------------------------------------
# Pallas kernel: full MADE forward (direct mode) fused in one body.
# Weights are mask-folded, padded, bf16, [in, out]; biases are f32 [1, out].
# ----------------------------------------------------------------------------
def made_kernel(x_ref,
                w1_ref, b1_ref,
                w2_ref, b2_ref,
                w3_ref, b3_ref,
                u_ref, ld_ref, *, dpad):
    x = x_ref[...]                                               # [TB, Dp] f32
    xb = x.astype(jnp.bfloat16)

    # joiner: masked linear D -> H  (mask pre-folded into w1)
    h = jnp.dot(xb, w1_ref[...],
                preferred_element_type=jnp.float32) + b1_ref[...]
    h = jnp.maximum(h, 0.0).astype(jnp.bfloat16)                 # ReLU

    # trunk hidden: masked linear H -> H
    h = jnp.dot(h, w2_ref[...],
                preferred_element_type=jnp.float32) + b2_ref[...]
    h = jnp.maximum(h, 0.0).astype(jnp.bfloat16)                 # ReLU

    # trunk output: single merged 2*Dp-wide matmul (256-lane native on v6e/v7x)
    out = jnp.dot(h, w3_ref[...],
                  preferred_element_type=jnp.float32) + b3_ref[...]
    m = out[:, :dpad]      # 128-lane-aligned slices: no cross-tile data movement
    a = out[:, dpad:]      # padded lanes of a are exactly 0 (zero weights + bias)

    u_ref[...] = (x - m) * jnp.exp(-a)
    # lane-dense logdet slab: broadcast across 128 lanes, wrapper reads lane 0
    ld = -jnp.sum(a, axis=-1, keepdims=True)
    ld_ref[...] = jnp.broadcast_to(ld, ld_ref.shape)


# ----------------------------------------------------------------------------
# VMEM budget: resident weights (x buffer count) + double-buffered act tiles.
# ----------------------------------------------------------------------------
def _vmem_budget_bytes(tb, dp, hp, single_buffer_weights):
    wbuf = 1 if single_buffer_weights else 2
    wbytes = wbuf * 2 * (dp * hp + hp * hp + hp * 2 * dp)        # bf16 weights
    bbytes = wbuf * 4 * (hp + hp + 2 * dp)                       # f32 biases
    abytes = 2 * 4 * (tb * dp + tb * dp + tb * 128)              # dbl-buffered x/u/ld
    need = int((wbytes + bbytes + abytes) * 1.5) + (4 << 20)     # temps + headroom
    try:
        phys = pltpu.get_tpu_info().vmem_capacity_bytes
    except Exception:
        phys = 64 << 20                                          # v7x-conservative
    return max(16 << 20, min(need, int(phys * 0.85)))


# ----------------------------------------------------------------------------
# Wrapper: batch-tiled pallas_call with weight-resident (single-buffered) specs.
# ----------------------------------------------------------------------------
def made_forward(x, kp, *, block_b=256):
    """x: [B, D] float32. Returns (u [B, D], -sum(a) [B, 1])."""
    B, D = x.shape
    assert D == kp["D"]
    Dp, Hp = kp["Dp"], kp["Hp"]

    # Batch tile: multiple of 8 sublanes; guarantee >=2 grid steps when B > 8
    # so dimension_semantics=("parallel",) can shard across both v7x TensorCores.
    if B <= block_b:
        tb = max(8, _round_up(pl.cdiv(B, 2), 8))
    else:
        tb = block_b
    Bp = _round_up(B, tb)
    grid = (Bp // tb,)

    # Zero-pad activations to (Bp, Dp): lane-dense tiles, no masked stores,
    # no garbage rows feeding exp(-a).
    xp = jnp.zeros((Bp, Dp), jnp.float32).at[:B, :D].set(x)

    const = lambda i: (0, 0)        # weights/biases resident across grid steps
    batched = lambda i: (i, 0)      # activations blocked along batch

    def run(single_buffer_weights):
        def wspec(shape):
            if single_buffer_weights:
                return pl.BlockSpec(shape, const, pipeline_mode=pl.Buffered(1))
            return pl.BlockSpec(shape, const)

        in_specs = [
            pl.BlockSpec((tb, Dp), batched),   # x
            wspec((Dp, Hp)),                   # w1 (mask-folded, padded, bf16)
            wspec((1, Hp)),                    # b1
            wspec((Hp, Hp)),                   # w2
            wspec((1, Hp)),                    # b2
            wspec((Hp, 2 * Dp)),               # w3 (m half | a half)
            wspec((1, 2 * Dp)),                # b3
        ]
        out_specs = [
            pl.BlockSpec((tb, Dp), batched),   # u (lane-dense)
            pl.BlockSpec((tb, 128), batched),  # logdet slab (lane-dense)
        ]
        out_shape = (
            jax.ShapeDtypeStruct((Bp, Dp), jnp.float32),
            jax.ShapeDtypeStruct((Bp, 128), jnp.float32),
        )
        return pl.pallas_call(
            functools.partial(made_kernel, dpad=Dp),
            out_shape=out_shape,
            grid=grid,
            in_specs=in_specs,
            out_specs=out_specs,
            compiler_params=pltpu.CompilerParams(
                dimension_semantics=("parallel",),
                vmem_limit_bytes=_vmem_budget_bytes(tb, Dp, Hp,
                                                    single_buffer_weights),
            ),
        )(xp, kp["w1"], kp["b1"], kp["w2"], kp["b2"], kp["w3"], kp["b3"])

    try:
        u_p, ld_p = run(single_buffer_weights=True)
    except Exception:
        # TODO(synk): drop this fallback once pl.Buffered(1) on top-level
        # pallas_call BlockSpecs is guaranteed by the deployed JAX version.
        u_p, ld_p = run(single_buffer_weights=False)

    return u_p[:B, :D], ld_p[:B, :1]


# ----------------------------------------------------------------------------
# Parameter init (matches MADE(num_inputs, num_hidden) layout) + kernel prep.
# ----------------------------------------------------------------------------
def init_raw_params(key, num_inputs, num_hidden):
    """Raw PyTorch-convention params: weights [out, in], biases [out]."""
    D, H = num_inputs, num_hidden
    ks = jax.random.split(key, 6)

    def linear(kw, kb, fan_in, fan_out):
        bound = 1.0 / jnp.sqrt(fan_in)
        w = jax.random.uniform(kw, (fan_out, fan_in), jnp.float32, -bound, bound)
        b = jax.random.uniform(kb, (fan_out,), jnp.float32, -bound, bound)
        return w, b

    w1, b1 = linear(ks[0], ks[1], D, H)        # joiner D -> H
    w2, b2 = linear(ks[2], ks[3], H, H)        # trunk hidden H -> H
    w3, b3 = linear(ks[4], ks[5], H, 2 * D)    # trunk output H -> 2D

    input_mask = get_mask(D, H, D, mask_type='input')         # [H, D]
    hidden_mask = get_mask(H, H, D)                           # [H, H]
    output_mask = get_mask(H, 2 * D, D, mask_type='output')   # [2D, H]

    return (w1, b1, w2, b2, w3, b3), (input_mask, hidden_mask, output_mask)


def prepare_kernel_params(raw, masks):
    """Fold masks, transpose to [in, out], pad to multiples of 128, merge the
    output layer into one [Hp, 2*Dp] slab (m half | a half), cast weights bf16.
    Padded weight rows/cols and bias lanes are exactly 0 so padded lanes of `a`
    are 0 and the logdet reduction is unaffected."""
    (w1, b1, w2, b2, w3, b3) = raw
    (input_mask, hidden_mask, output_mask) = masks
    H, D = w1.shape
    Dp, Hp = _round_up(D, 128), _round_up(H, 128)

    w1m = (w1 * input_mask).T            # [D, H]
    w2m = (w2 * hidden_mask).T           # [H, H]
    w3m = (w3 * output_mask).T           # [H, 2D]

    w1p = jnp.zeros((Dp, Hp), jnp.float32).at[:D, :H].set(w1m).astype(jnp.bfloat16)
    w2p = jnp.zeros((Hp, Hp), jnp.float32).at[:H, :H].set(w2m).astype(jnp.bfloat16)
    w3p = (jnp.zeros((Hp, 2 * Dp), jnp.float32)
           .at[:H, :D].set(w3m[:, :D])          # m half -> lanes [0, Dp)
           .at[:H, Dp:Dp + D].set(w3m[:, D:])   # a half -> lanes [Dp, 2*Dp)
           .astype(jnp.bfloat16))

    b1p = jnp.zeros((1, Hp), jnp.float32).at[:, :H].set(b1)
    b2p = jnp.zeros((1, Hp), jnp.float32).at[:, :H].set(b2)
    b3p = (jnp.zeros((1, 2 * Dp), jnp.float32)
           .at[:, :D].set(b3[:D])
           .at[:, Dp:Dp + D].set(b3[D:]))

    return dict(w1=w1p, b1=b1p, w2=w2p, b2=b2p, w3=w3p, b3=b3p,
                D=D, H=H, Dp=Dp, Hp=Hp)


# ----------------------------------------------------------------------------
# References for validation.
# ----------------------------------------------------------------------------
def made_reference_bf16(x, kp):
    """Same padded bf16 weights / f32 accumulation as the kernel."""
    B, D = x.shape
    Dp = kp["Dp"]
    xp = jnp.zeros((B, Dp), jnp.float32).at[:, :D].set(x)
    xb = xp.astype(jnp.bfloat16)
    h = jnp.dot(xb, kp["w1"], preferred_element_type=jnp.float32) + kp["b1"]
    h = jnp.maximum(h, 0.0).astype(jnp.bfloat16)
    h = jnp.dot(h, kp["w2"], preferred_element_type=jnp.float32) + kp["b2"]
    h = jnp.maximum(h, 0.0).astype(jnp.bfloat16)
    out = jnp.dot(h, kp["w3"], preferred_element_type=jnp.float32) + kp["b3"]
    m, a = out[:, :Dp], out[:, Dp:]
    u = (xp - m) * jnp.exp(-a)
    return u[:, :D], -jnp.sum(a, axis=-1, keepdims=True)


def made_reference_f32(x, raw, masks):
    """Full-precision reference of the original PyTorch math."""
    (w1, b1, w2, b2, w3, b3) = raw
    (input_mask, hidden_mask, output_mask) = masks
    D = x.shape[1]
    h = jnp.maximum(x @ (w1 * input_mask).T + b1, 0.0)
    h = jnp.maximum(h @ (w2 * hidden_mask).T + b2, 0.0)
    out = h @ (w3 * output_mask).T + b3
    m, a = out[:, :D], out[:, D:]
    u = (x - m) * jnp.exp(-a)
    return u, -jnp.sum(a, axis=-1, keepdims=True)


# TODO(synk): cond_inputs path (num_cond_inputs) and the sequential 'inverse'
# sampling mode are not implemented; only the 'direct' forward is kernelized.

if __name__ == "__main__":
    B, D, H = 16, 8, 32  # batch, num_inputs, num_hidden

    key = jax.random.PRNGKey(0)
    k_x, k_p = jax.random.split(key)

    x = jax.random.normal(k_x, (B, D), dtype=jnp.float32)
    raw, masks = init_raw_params(k_p, D, H)
    kparams = prepare_kernel_params(raw, masks)

    u, neg_logdet = made_forward(x, kparams)
    u = jax.block_until_ready(u)
    neg_logdet = jax.block_until_ready(neg_logdet)

    # Exact-ish match against the same bf16/f32-acc math.
    u_ref, ld_ref = made_reference_bf16(x, kparams)
    assert jnp.allclose(u, u_ref, atol=1e-3, rtol=1e-3), "bf16 reference mismatch"
    assert jnp.allclose(neg_logdet, ld_ref, atol=1e-3, rtol=1e-3), "bf16 logdet mismatch"

    # Loose sanity check against the full-precision original semantics.
    # (bf16 weights are an intentional precision drop vs the f32 PyTorch reference.)
    u_f32, ld_f32 = made_reference_f32(x, raw, masks)
    assert jnp.allclose(u, u_f32, atol=5e-2, rtol=5e-2), "f32 semantics drift"
    assert jnp.allclose(neg_logdet, ld_f32, atol=5e-2, rtol=5e-2), "f32 logdet drift"

    print("KERNEL_OK")
</pallas_src>

<mosaic_0001>
module attributes {stable_mosaic.version = 11 : i64} {
  func.func @made_kernel(%arg0: i32, %arg1: memref<8x128xf32, #tpu.memory_space<vmem>>, %arg2: memref<128x128xbf16, #tpu.memory_space<vmem>>, %arg3: memref<1x128xf32, #tpu.memory_space<vmem>>, %arg4: memref<128x128xbf16, #tpu.memory_space<vmem>>, %arg5: memref<1x128xf32, #tpu.memory_space<vmem>>, %arg6: memref<128x256xbf16, #tpu.memory_space<vmem>>, %arg7: memref<1x256xf32, #tpu.memory_space<vmem>>, %arg8: memref<8x128xf32, #tpu.memory_space<vmem>>, %arg9: memref<8x128xf32, #tpu.memory_space<vmem>>) attributes {dimension_semantics = [#tpu.dimension_semantics<parallel>], iteration_bounds = array<i64: 2>, scalar_prefetch = 0 : i64, scratch_operands = 0 : i64, tpu.core_type = #tpu.core_type<tc>, window_params = [{transform_indices = @transform_0, window_bounds = array<i64: 8, 128>}, {pipeline_mode = #tpu.pipeline_mode<synchronous>, transform_indices = @transform_1, window_bounds = array<i64: 128, 128>}, {pipeline_mode = #tpu.pipeline_mode<synchronous>, transform_indices = @transform_2, window_bounds = array<i64: 1, 128>}, {pipeline_mode = #tpu.pipeline_mode<synchronous>, transform_indices = @transform_3, window_bounds = array<i64: 128, 128>}, {pipeline_mode = #tpu.pipeline_mode<synchronous>, transform_indices = @transform_4, window_bounds = array<i64: 1, 128>}, {pipeline_mode = #tpu.pipeline_mode<synchronous>, transform_indices = @transform_5, window_bounds = array<i64: 128, 256>}, {pipeline_mode = #tpu.pipeline_mode<synchronous>, transform_indices = @transform_6, window_bounds = array<i64: 1, 256>}, {transform_indices = @transform_7, window_bounds = array<i64: 8, 128>}, {transform_indices = @transform_8, window_bounds = array<i64: 8, 128>}]} {
    %c0 = arith.constant 0 : index
    %c0_0 = arith.constant 0 : index
    %0 = vector.load %arg1[%c0, %c0_0] : memref<8x128xf32, #tpu.memory_space<vmem>>, vector<8x128xf32>
    %1 = arith.truncf %0 : vector<8x128xf32> to vector<8x128xbf16>
    %c0_1 = arith.constant 0 : index
    %c0_2 = arith.constant 0 : index
    %2 = vector.load %arg2[%c0_1, %c0_2] : memref<128x128xbf16, #tpu.memory_space<vmem>>, vector<128x128xbf16>
    %cst = arith.constant dense<0.000000e+00> : vector<8x128xf32>
    %3 = tpu.matmul %1, %2, %cst {dimension_numbers = #tpu.dot_dimension_numbers<[1], [0], [0], [1], [0, 0, 1, 1], [], []>} : vector<8x128xbf16>, vector<128x128xbf16>, vector<8x128xf32> -> vector<8x128xf32>
    %c0_3 = arith.constant 0 : index
    %c0_4 = arith.constant 0 : index
    %4 = vector.load %arg3[%c0_3, %c0_4] : memref<1x128xf32, #tpu.memory_space<vmem>>, vector<1x128xf32>
    %5 = vector.broadcast %4 : vector<1x128xf32> to vector<8x128xf32>
    %6 = arith.addf %3, %5 : vector<8x128xf32>
    %cst_5 = arith.constant 0.000000e+00 : f32
    %7 = vector.broadcast %cst_5 : f32 to vector<8x128xf32>
    %8 = arith.maximumf %6, %7 : vector<8x128xf32>
    %9 = arith.truncf %8 : vector<8x128xf32> to vector<8x128xbf16>
    %c0_6 = arith.constant 0 : index
    %c0_7 = arith.constant 0 : index
    %10 = vector.load %arg4[%c0_6, %c0_7] : memref<128x128xbf16, #tpu.memory_space<vmem>>, vector<128x128xbf16>
    %cst_8 = arith.constant dense<0.000000e+00> : vector<8x128xf32>
    %11 = tpu.matmul %9, %10, %cst_8 {dimension_numbers = #tpu.dot_dimension_numbers<[1], [0], [0], [1], [0, 0, 1, 1], [], []>} : vector<8x128xbf16>, vector<128x128xbf16>, vector<8x128xf32> -> vector<8x128xf32>
    %c0_9 = arith.constant 0 : index
    %c0_10 = arith.constant 0 : index
    %12 = vector.load %arg5[%c0_9, %c0_10] : memref<1x128xf32, #tpu.memory_space<vmem>>, vector<1x128xf32>
    %13 = vector.broadcast %12 : vector<1x128xf32> to vector<8x128xf32>
    %14 = arith.addf %11, %13 : vector<8x128xf32>
    %cst_11 = arith.constant 0.000000e+00 : f32
    %15 = vector.broadcast %cst_11 : f32 to vector<8x128xf32>
    %16 = arith.maximumf %14, %15 : vector<8x128xf32>
    %17 = arith.truncf %16 : vector<8x128xf32> to vector<8x128xbf16>
    %c0_12 = arith.constant 0 : index
    %c0_13 = arith.constant 0 : index
    %18 = vector.load %arg6[%c0_12, %c0_13] : memref<128x256xbf16, #tpu.memory_space<vmem>>, vector<128x256xbf16>
    %cst_14 = arith.constant dense<0.000000e+00> : vector<8x256xf32>
    %19 = tpu.matmul %17, %18, %cst_14 {dimension_numbers = #tpu.dot_dimension_numbers<[1], [0], [0], [1], [0, 0, 1, 1], [], []>} : vector<8x128xbf16>, vector<128x256xbf16>, vector<8x256xf32> -> vector<8x256xf32>
    %c0_15 = arith.constant 0 : index
    %c0_16 = arith.constant 0 : index
    %20 = vector.load %arg7[%c0_15, %c0_16] : memref<1x256xf32, #tpu.memory_space<vmem>>, vector<1x256xf32>
    %21 = vector.broadcast %20 : vector<1x256xf32> to vector<8x256xf32>
    %22 = arith.addf %19, %21 : vector<8x256xf32>
    %23 = vector.extract_strided_slice %22 {offsets = [0, 0], sizes = [8, 128], strides = [1, 1]} : vector<8x256xf32> to vector<8x128xf32>
    %24 = vector.extract_strided_slice %22 {offsets = [0, 128], sizes = [8, 128], strides = [1, 1]} : vector<8x256xf32> to vector<8x128xf32>
    %25 = arith.subf %0, %23 : vector<8x128xf32>
    %cst_17 = arith.constant 0.000000e+00 : f32
    %26 = vector.broadcast %cst_17 : f32 to vector<8x128xf32>
    %27 = arith.subf %26, %24 : vector<8x128xf32>
    %28 = math.exp %27 : vector<8x128xf32>
    %29 = arith.mulf %25, %28 : vector<8x128xf32>
    %c0_18 = arith.constant 0 : index
    %c0_19 = arith.constant 0 : index
    %30 = vector.load %arg8[%c0_18, %c0_19] : memref<8x128xf32, #tpu.memory_space<vmem>>, vector<8x128xf32>
    tpu.vector_store %arg8[%c0_18, %c0_19], %29 {strides = array<i32>} : memref<8x128xf32, #tpu.memory_space<vmem>>, vector<8x128xf32>,
    %cst_20 = arith.constant dense<0.000000e+00> : vector<8xf32>
    %31 = vector.multi_reduction <add>, %24, %cst_20 [1] : vector<8x128xf32> to vector<8xf32>
    %32 = vector.shape_cast %31 : vector<8xf32> to vector<8x1xf32>
    %cst_21 = arith.constant 0.000000e+00 : f32
    %33 = vector.broadcast %cst_21 : f32 to vector<8x1xf32>
    %34 = arith.subf %33, %32 : vector<8x1xf32>
    %35 = vector.shape_cast %34 : vector<8x1xf32> to vector<8x1xf32>
    %36 = vector.broadcast %35 : vector<8x1xf32> to vector<8x128xf32>
    %c0_22 = arith.constant 0 : index
    %c0_23 = arith.constant 0 : index
    %37 = vector.load %arg9[%c0_22, %c0_23] : memref<8x128xf32, #tpu.memory_space<vmem>>, vector<8x128xf32>
    tpu.vector_store %arg9[%c0_22, %c0_23], %36 {strides = array<i32>} : memref<8x128xf32, #tpu.memory_space<vmem>>, vector<8x128xf32>,
    return
  }
  func.func @transform_0(%arg0: i32) -> (i32, i32) {
    %c0_i32 = arith.constant 0 : i32
    %c0_i32_0 = arith.constant 0 : i32
    return %arg0, %c0_i32 : i32, i32
  }
  func.func @transform_1(%arg0: i32) -> (i32, i32) {
    %c0_i32 = arith.constant 0 : i32
    %c0_i32_0 = arith.constant 0 : i32
    %c0_i32_1 = arith.constant 0 : i32
    return %c0_i32, %c0_i32_0 : i32, i32
  }
  func.func @transform_2(%arg0: i32) -> (i32, i32) {
    %c0_i32 = arith.constant 0 : i32
    %c0_i32_0 = arith.constant 0 : i32
    %c0_i32_1 = arith.constant 0 : i32
    return %c0_i32, %c0_i32_0 : i32, i32
  }
  func.func @transform_3(%arg0: i32) -> (i32, i32) {
    %c0_i32 = arith.constant 0 : i32
    %c0_i32_0 = arith.constant 0 : i32
    %c0_i32_1 = arith.constant 0 : i32
    return %c0_i32, %c0_i32_0 : i32, i32
  }
  func.func @transform_4(%arg0: i32) -> (i32, i32) {
    %c0_i32 = arith.constant 0 : i32
    %c0_i32_0 = arith.constant 0 : i32
    %c0_i32_1 = arith.constant 0 : i32
    return %c0_i32, %c0_i32_0 : i32, i32
  }
  func.func @transform_5(%arg0: i32) -> (i32, i32) {
    %c0_i32 = arith.constant 0 : i32
    %c0_i32_0 = arith.constant 0 : i32
    %c0_i32_1 = arith.constant 0 : i32
    return %c0_i32, %c0_i32_0 : i32, i32
  }
  func.func @transform_6(%arg0: i32) -> (i32, i32) {
    %c0_i32 = arith.constant 0 : i32
    %c0_i32_0 = arith.constant 0 : i32
    %c0_i32_1 = arith.constant 0 : i32
    return %c0_i32, %c0_i32_0 : i32, i32
  }
  func.func @transform_7(%arg0: i32) -> (i32, i32) {
    %c0_i32 = arith.constant 0 : i32
    %c0_i32_0 = arith.constant 0 : i32
    return %arg0, %c0_i32 : i32, i32
  }
  func.func @transform_8(%arg0: i32) -> (i32, i32) {
    %c0_i32 = arith.constant 0 : i32
    %c0_i32_0 = arith.constant 0 : i32
    return %arg0, %c0_i32 : i32, i32
  }
}

module attributes {stable_mosaic.version = 11 : i64} {
  func.func @made_kernel(%arg0: i32, %arg1: memref<8x128xf32, #tpu.memory_space<vmem>>, %arg2: memref<128x128xbf16, #tpu.memory_space<vmem>>, %arg3: memref<1x128xf32, #tpu.memory_space<vmem>>, %arg4: memref<128x128xbf16, #tpu.memory_space<vmem>>, %arg5: memref<1x128xf32, #tpu.memory_space<vmem>>, %arg6: memref<128x256xbf16, #tpu.memory_space<vmem>>, %arg7: memref<1x256xf32, #tpu.memory_space<vmem>>, %arg8: memref<8x128xf32, #tpu.memory_space<vmem>>, %arg9: memref<8x128xf32, #tpu.memory_space<vmem>>) attributes {dimension_semantics = [#tpu.dimension_semantics<parallel>], iteration_bounds = array<i64: 2>, scalar_prefetch = 0 : i64, scratch_operands = 0 : i64, tpu.core_type = #tpu.core_type<tc>, window_params = [{transform_indices = @transform_0, window_bounds = array<i64: 8, 128>}, {pipeline_mode = #tpu.pipeline_mode<synchronous>, transform_indices = @transform_1, window_bounds = array<i64: 128, 128>}, {pipeline_mode = #tpu.pipeline_mode<synchronous>, transform_indices = @transform_2, window_bounds = array<i64: 1, 128>}, {pipeline_mode = #tpu.pipeline_mode<synchronous>, transform_indices = @transform_3, window_bounds = array<i64: 128, 128>}, {pipeline_mode = #tpu.pipeline_mode<synchronous>, transform_indices = @transform_4, window_bounds = array<i64: 1, 128>}, {pipeline_mode = #tpu.pipeline_mode<synchronous>, transform_indices = @transform_5, window_bounds = array<i64: 128, 256>}, {pipeline_mode = #tpu.pipeline_mode<synchronous>, transform_indices = @transform_6, window_bounds = array<i64: 1, 256>}, {transform_indices = @transform_7, window_bounds = array<i64: 8, 128>}, {transform_indices = @transform_8, window_bounds = array<i64: 8, 128>}]} {
    %c0 = arith.constant 0 : index
    %c0_0 = arith.constant 0 : index
    %0 = vector.load %arg1[%c0, %c0_0] : memref<8x128xf32, #tpu.memory_space<vmem>>, vector<8x128xf32>
    %1 = arith.truncf %0 : vector<8x128xf32> to vector<8x128xbf16>
    %c0_1 = arith.constant 0 : index
    %c0_2 = arith.constant 0 : index
    %2 = vector.load %arg2[%c0_1, %c0_2] : memref<128x128xbf16, #tpu.memory_space<vmem>>, vector<128x128xbf16>
    %cst = arith.constant dense<0.000000e+00> : vector<8x128xf32>
    %3 = tpu.matmul %1, %2, %cst {dimension_numbers = #tpu.dot_dimension_numbers<[1], [0], [0], [1], [0, 0, 1, 1], [], []>} : vector<8x128xbf16>, vector<128x128xbf16>, vector<8x128xf32> -> vector<8x128xf32>
    %c0_3 = arith.constant 0 : index
    %c0_4 = arith.constant 0 : index
    %4 = vector.load %arg3[%c0_3, %c0_4] : memref<1x128xf32, #tpu.memory_space<vmem>>, vector<1x128xf32>
    %5 = vector.broadcast %4 : vector<1x128xf32> to vector<8x128xf32>
    %6 = arith.addf %3, %5 : vector<8x128xf32>
    %cst_5 = arith.constant 0.000000e+00 : f32
    %7 = vector.broadcast %cst_5 : f32 to vector<8x128xf32>
    %8 = arith.maximumf %6, %7 : vector<8x128xf32>
    %9 = arith.truncf %8 : vector<8x128xf32> to vector<8x128xbf16>
    %c0_6 = arith.constant 0 : index
    %c0_7 = arith.constant 0 : index
    %10 = vector.load %arg4[%c0_6, %c0_7] : memref<128x128xbf16, #tpu.memory_space<vmem>>, vector<128x128xbf16>
    %cst_8 = arith.constant dense<0.000000e+00> : vector<8x128xf32>
    %11 = tpu.matmul %9, %10, %cst_8 {dimension_numbers = #tpu.dot_dimension_numbers<[1], [0], [0], [1], [0, 0, 1, 1], [], []>} : vector<8x128xbf16>, vector<128x128xbf16>, vector<8x128xf32> -> vector<8x128xf32>
    %c0_9 = arith.constant 0 : index
    %c0_10 = arith.constant 0 : index
    %12 = vector.load %arg5[%c0_9, %c0_10] : memref<1x128xf32, #tpu.memory_space<vmem>>, vector<1x128xf32>
    %13 = vector.broadcast %12 : vector<1x128xf32> to vector<8x128xf32>
    %14 = arith.addf %11, %13 : vector<8x128xf32>
    %cst_11 = arith.constant 0.000000e+00 : f32
    %15 = vector.broadcast %cst_11 : f32 to vector<8x128xf32>
    %16 = arith.maximumf %14, %15 : vector<8x128xf32>
    %17 = arith.truncf %16 : vector<8x128xf32> to vector<8x128xbf16>
    %c0_12 = arith.constant 0 : index
    %c0_13 = arith.constant 0 : index
    %18 = vector.load %arg6[%c0_12, %c0_13] : memref<128x256xbf16, #tpu.memory_space<vmem>>, vector<128x256xbf16>
    %cst_14 = arith.constant dense<0.000000e+00> : vector<8x256xf32>
    %19 = tpu.matmul %17, %18, %cst_14 {dimension_numbers = #tpu.dot_dimension_numbers<[1], [0], [0], [1], [0, 0, 1, 1], [], []>} : vector<8x128xbf16>, vector<128x256xbf16>, vector<8x256xf32> -> vector<8x256xf32>
    %c0_15 = arith.constant 0 : index
    %c0_16 = arith.constant 0 : index
    %20 = vector.load %arg7[%c0_15, %c0_16] : memref<1x256xf32, #tpu.memory_space<vmem>>, vector<1x256xf32>
    %21 = vector.broadcast %20 : vector<1x256xf32> to vector<8x256xf32>
    %22 = arith.addf %19, %21 : vector<8x256xf32>
    %23 = vector.extract_strided_slice %22 {offsets = [0, 0], sizes = [8, 128], strides = [1, 1]} : vector<8x256xf32> to vector<8x128xf32>
    %24 = vector.extract_strided_slice %22 {offsets = [0, 128], sizes = [8, 128], strides = [1, 1]} : vector<8x256xf32> to vector<8x128xf32>
    %25 = arith.subf %0, %23 : vector<8x128xf32>
    %cst_17 = arith.constant 0.000000e+00 : f32
    %26 = vector.broadcast %cst_17 : f32 to vector<8x128xf32>
    %27 = arith.subf %26, %24 : vector<8x128xf32>
    %28 = math.exp %27 : vector<8x128xf32>
    %29 = arith.mulf %25, %28 : vector<8x128xf32>
    %c0_18 = arith.constant 0 : index
    %c0_19 = arith.constant 0 : index
    %30 = vector.load %arg8[%c0_18, %c0_19] : memref<8x128xf32, #tpu.memory_space<vmem>>, vector<8x128xf32>
    tpu.vector_store %arg8[%c0_18, %c0_19], %29 {strides = array<i32>} : memref<8x128xf32, #tpu.memory_space<vmem>>, vector<8x128xf32>,
    %cst_20 = arith.constant dense<0.000000e+00> : vector<8xf32>
    %31 = vector.multi_reduction <add>, %24, %cst_20 [1] : vector<8x128xf32> to vector<8xf32>
    %32 = vector.shape_cast %31 : vector<8xf32> to vector<8x1xf32>
    %cst_21 = arith.constant 0.000000e+00 : f32
    %33 = vector.broadcast %cst_21 : f32 to vector<8x1xf32>
    %34 = arith.subf %33, %32 : vector<8x1xf32>
    %35 = vector.shape_cast %34 : vector<8x1xf32> to vector<8x1xf32>
    %36 = vector.broadcast %35 : vector<8x1xf32> to vector<8x128xf32>
    %c0_22 = arith.constant 0 : index
    %c0_23 = arith.constant 0 : index
    %37 = vector.load %arg9[%c0_22, %c0_23] : memref<8x128xf32, #tpu.memory_space<vmem>>, vector<8x128xf32>
    tpu.vector_store %arg9[%c0_22, %c0_23], %36 {strides = array<i32>} : memref<8x128xf32, #tpu.memory_space<vmem>>, vector<8x128xf32>,
    return
  }
  func.func @transform_0(%arg0: i32) -> (i32, i32) {
    %c0_i32 = arith.constant 0 : i32
    %c0_i32_0 = arith.constant 0 : i32
    return %arg0, %c0_i32 : i32, i32
  }
  func.func @transform_1(%arg0: i32) -> (i32, i32) {
    %c0_i32 = arith.constant 0 : i32
    %c0_i32_0 = arith.constant 0 : i32
    %c0_i32_1 = arith.constant 0 : i32
    return %c0_i32, %c0_i32_0 : i32, i32
  }
  func.func @transform_2(%arg0: i32) -> (i32, i32) {
    %c0_i32 = arith.constant 0 : i32
    %c0_i32_0 = arith.constant 0 : i32
    %c0_i32_1 = arith.constant 0 : i32
    return %c0_i32, %c0_i32_0 : i32, i32
  }
  func.func @transform_3(%arg0: i32) -> (i32, i32) {
    %c0_i32 = arith.constant 0 : i32
    %c0_i32_0 = arith.constant 0 : i32
    %c0_i32_1 = arith.constant 0 : i32
    return %c0_i32, %c0_i32_0 : i32, i32
  }
  func.func @transform_4(%arg0: i32) -> (i32, i32) {
    %c0_i32 = arith.constant 0 : i32
    %c0_i32_0 = arith.constant 0 : i32
    %c0_i32_1 = arith.constant 0 : i32
    return %c0_i32, %c0_i32_0 : i32, i32
  }
  func.func @transform_5(%arg0: i32) -> (i32, i32) {
    %c0_i32 = arith.constant 0 : i32
    %c0_i32_0 = arith.constant 0 : i32
    %c0_i32_1 = arith.constant 0 : i32
    return %c0_i32, %c0_i32_0 : i32, i32
  }
  func.func @transform_6(%arg0: i32) -> (i32, i32) {
    %c0_i32 = arith.constant 0 : i32
    %c0_i32_0 = arith.constant 0 : i32
    %c0_i32_1 = arith.constant 0 : i32
    return %c0_i32, %c0_i32_0 : i32, i32
  }
  func.func @transform_7(%arg0: i32) -> (i32, i32) {
    %c0_i32 = arith.constant 0 : i32
    %c0_i32_0 = arith.constant 0 : i32
    return %arg0, %c0_i32 : i32, i32
  }
  func.func @transform_8(%arg0: i32) -> (i32, i32) {
    %c0_i32 = arith.constant 0 : i32
    %c0_i32_0 = arith.constant 0 : i32
    return %arg0, %c0_i32 : i32, i32
  }
}

</mosaic_0001>

<llo_original>
// kernel: tpu_custom_call.1
$region0: #{tpu_custom_call.1}
  #allocation0 [shape = 'u32[]', space=smem, size = 0x4, offset = 0x4, fixed_abs, tag = 'smem constant byte address 0x4 - core index']
  #allocation1 [shape = 'u32[144,128]{1,0:T(1,128)}', space=vmem, size = 0x12000, scoped, tag = 'internal scratch']
  %s0 = inlined_call_operand.hbm [shape: f32[16,128], index: 0, kind: input, shape index: {}]
  %s1 = inlined_call_operand.hbm [shape: bf16[128,128], index: 1, kind: input, shape index: {}]
  %s2 = inlined_call_operand.vmem [shape: f32[1,128], index: 2, kind: input, shape index: {}]
  %s3 = inlined_call_operand.hbm [shape: bf16[128,128], index: 3, kind: input, shape index: {}]
  %s4 = inlined_call_operand.vmem [shape: f32[1,128], index: 4, kind: input, shape index: {}]
  %s5 = inlined_call_operand.hbm [shape: bf16[128,256], index: 5, kind: input, shape index: {}]
  %s6 = inlined_call_operand.vmem [shape: f32[1,256], index: 6, kind: input, shape index: {}]
  %s7 = inlined_call_operand.hbm [shape: f32[16,128], index: 7, kind: output, shape index: {0}]
  %s8 = inlined_call_operand.hbm [shape: f32[16,128], index: 8, kind: output, shape index: {1}]
  %9 = xla_tuple %s7, %s8
  %s10 = sld [smem:[#allocation0]]
  $region85: #{tpu_custom_call.1} parent=0
    _
  %s12 = ssub.s32 1, %s10
  %s13 = scalar_select 0, %s12, %s10
  $region1: #{tpu_custom_call.1} parent=0
    #allocation2 [shape = 'u8[8192]{0}', space=vmem, size = 0x2000, scoped, tag = 'input window, operand 0']
    #allocation3 [shape = 's32[2]{0}', space=sflag, size = 0x8, scoped, tag = 'scoped memory for tpu_custom_call.1']
    #allocation4 [shape = 's32[2]{0}', space=sflag, size = 0x8, scoped, tag = 'scoped memory for tpu_custom_call.1']
    #allocation5 [shape = 'u8[32768]{0}', space=vmem, size = 0x8000, scoped, tag = 'input window, operand 1, single buffered']
    #allocation6 [shape = 's32[1]{0}', space=sflag, size = 0x4, scoped, tag = 'scoped memory for tpu_custom_call.1']
    #allocation7 [shape = 'u8[32768]{0}', space=vmem, size = 0x8000, scoped, tag = 'input window, operand 3, single buffered']
    #allocation8 [shape = 'u8[65536]{0}', space=vmem, size = 0x10000, scoped, tag = 'input window, operand 5, single buffered']
    #allocation9 [shape = 's32[1]{0}', space=sflag, size = 0x4, scoped, tag = 'scoped memory for tpu_custom_call.1']
    #allocation10 [shape = 'u8[8192]{0}', space=vmem, size = 0x2000, scoped, tag = 'output window, operand 0']
    #allocation11 [shape = 'u8[8192]{0}', space=vmem, size = 0x2000, scoped, tag = 'output window, operand 1']
    #allocation12 [shape = 's32[2]{0}', space=sflag, size = 0x8, scoped, tag = 'scoped memory for tpu_custom_call.1']
    %14 = vsyncpa [#allocation3], 0
    %s15 = scalar_lea.sflag [#allocation3], 1
    %16 = vsyncpa %s15, 0
    %17 = vsyncpa [#allocation6], 0
    %18 = vsyncpa [#allocation9], 0
    %19 = vsyncpa [#allocation4], 0
    %s20 = scalar_lea.sflag [#allocation4], 1
    %21 = vsyncpa %s20, 0
    %22 = vsyncpa [#allocation12], 0
    %s23 = scalar_lea.sflag [#allocation12], 1
    %24 = vsyncpa %s23, 0
    loop: start=0, step=1, limit=4
    $region2: #{tpu_custom_call.1} parent=1 // loop_pre_header
      _
    $region3: #{tpu_custom_call.1} parent=1 // loop_header
      %s26 = sphi 0, %s30
      %p27 = scmp.ge.s32.totalorder %s26, 4
      %s36 = sphi 0, %s38
      %s39 = sphi 0, %s36
      %s40 = sphi 0, %s39
      %s56 = sphi 0, %s40
      %s60 = sphi 0, %s60
      %s62 = sphi 0, %s60
      %s63 = sphi 0, %s62
      %s77 = sphi 0, %s63
      %s81 = sphi 0, %s81
      %s83 = sphi 0, %s81
      %s84 = sphi 0, %s83
      %s98 = sphi 0, %s84
      %s102 = sphi 0, %s102
      %s104 = sphi 0, %s102
      %s105 = sphi 0, %s104
      %s119 = sphi 0, %s105
      %s123 = sphi 0, %s123
      %s125 = sphi 0, %s123
      %s126 = sphi 0, %s125
      %s140 = sphi 0, %s126
      %s144 = sphi 0, %s144
      %s146 = sphi 0, %s144
      %s147 = sphi 0, %s146
      %s161 = sphi 0, %s147
      %s165 = sphi 0, %s165
      %s167 = sphi 0, %s165
      %s168 = sphi 0, %s167
      %s182 = sphi 0, %s168
      %s188 = sphi 0, %s190
      %s191 = sphi 0, %s188
      %s192 = sphi 0, %s191
      %s208 = sphi 0, %s192
      %s214 = sphi 0, %s216
      %s217 = sphi 0, %s214
      %s218 = sphi 0, %s217
      %s234 = sphi 0, %s218
    $region4: #{tpu_custom_call.1} parent=1 // loop_header_branch
      %29 = sbr.rel (%p27) target = $region8
    $region5: #{tpu_custom_call.1} parent=1 // loop_body
      %s31 = ssub.s32 %s26, 1
      %s32 = ssub.s32 %s26, 2
      %s33 = sadd.s32 %s26, 1
      %s34 = ssub.s32 %s26, %s33
      %p35 = scmp.eq.s32.totalorder %s34, 0
      %s37 = sadd.s32 %s36, 1
      %s38 = scalar_select %p35, %s36, %s37
      %p41 = pneg %p35
      %p42 = scmp.eq.s32.totalorder %s26, 1
      %p43 = por %p41, %p42
      %p44 = scmp.ne.s32.totalorder %s36, %s39
      %p45 = scmp.eq.s32.totalorder %s26, 0
      %p46 = por %p44, %p45
      %p47 = scmp.ne.s32.totalorder %s36, %s39
      %p48 = scmp.eq.s32.totalorder %s31, 1
      %p49 = por %p47, %p48
      %p50 = scmp.ne.s32.totalorder %s39, %s40
      %p51 = scmp.eq.s32.totalorder %s31, 0
      %p52 = por %p50, %p51
      %p53 = scmp.ne.s32.totalorder %s39, %s40
      %p54 = scmp.eq.s32.totalorder %s32, 1
      %p55 = por %p53, %p54
      %p57 = scmp.ne.s32.totalorder %s40, %s56
      %p58 = scmp.eq.s32.totalorder %s32, 0
      %p59 = por %p57, %p58
      %s61 = sadd.s32 %s60, 1
      %p64 = scmp.eq.s32.totalorder %s26, 1
      %p65 = scmp.ne.s32.totalorder %s60, %s62
      %p66 = scmp.eq.s32.totalorder %s26, 0
      %p67 = por %p65, %p66
      %p68 = scmp.ne.s32.totalorder %s60, %s62
      %p69 = scmp.eq.s32.totalorder %s31, 1
      %p70 = por %p68, %p69
      %p71 = scmp.ne.s32.totalorder %s62, %s63
      %p72 = scmp.eq.s32.totalorder %s31, 0
      %p73 = por %p71, %p72
      %p74 = scmp.ne.s32.totalorder %s62, %s63
      %p75 = scmp.eq.s32.totalorder %s32, 1
      %p76 = por %p74, %p75
      %p78 = scmp.ne.s32.totalorder %s63, %s77
      %p79 = scmp.eq.s32.totalorder %s32, 0
      %p80 = por %p78, %p79
      %s82 = sadd.s32 %s81, 1
      %p85 = scmp.eq.s32.totalorder %s26, 1
      %p86 = scmp.ne.s32.totalorder %s81, %s83
      %p87 = scmp.eq.s32.totalorder %s26, 0
      %p88 = por %p86, %p87
      %p89 = scmp.ne.s32.totalorder %s81, %s83
      %p90 = scmp.eq.s32.totalorder %s31, 1
      %p91 = por %p89, %p90
      %p92 = scmp.ne.s32.totalorder %s83, %s84
      %p93 = scmp.eq.s32.totalorder %s31, 0
      %p94 = por %p92, %p93
      %p95 = scmp.ne.s32.totalorder %s83, %s84
      %p96 = scmp.eq.s32.totalorder %s32, 1
      %p97 = por %p95, %p96
      %p99 = scmp.ne.s32.totalorder %s84, %s98
      %p100 = scmp.eq.s32.totalorder %s32, 0
      %p101 = por %p99, %p100
      %s103 = sadd.s32 %s102, 1
      %p106 = scmp.eq.s32.totalorder %s26, 1
      %p107 = scmp.ne.s32.totalorder %s102, %s104
      %p108 = scmp.eq.s32.totalorder %s26, 0
      %p109 = por %p107, %p108
      %p110 = scmp.ne.s32.totalorder %s102, %s104
      %p111 = scmp.eq.s32.totalorder %s31, 1
      %p112 = por %p110, %p111
      %p113 = scmp.ne.s32.totalorder %s104, %s105
      %p114 = scmp.eq.s32.totalorder %s31, 0
      %p115 = por %p113, %p114
      %p116 = scmp.ne.s32.totalorder %s104, %s105
      %p117 = scmp.eq.s32.totalorder %s32, 1
      %p118 = por %p116, %p117
      %p120 = scmp.ne.s32.totalorder %s105, %s119
      %p121 = scmp.eq.s32.totalorder %s32, 0
      %p122 = por %p120, %p121
      %s124 = sadd.s32 %s123, 1
      %p127 = scmp.eq.s32.totalorder %s26, 1
      %p128 = scmp.ne.s32.totalorder %s123, %s125
      %p129 = scmp.eq.s32.totalorder %s26, 0
      %p130 = por %p128, %p129
      %p131 = scmp.ne.s32.totalorder %s123, %s125
      %p132 = scmp.eq.s32.totalorder %s31, 1
      %p133 = por %p131, %p132
      %p134 = scmp.ne.s32.totalorder %s125, %s126
      %p135 = scmp.eq.s32.totalorder %s31, 0
      %p136 = por %p134, %p135
      %p137 = scmp.ne.s32.totalorder %s125, %s126
      %p138 = scmp.eq.s32.totalorder %s32, 1
      %p139 = por %p137, %p138
      %p141 = scmp.ne.s32.totalorder %s126, %s140
      %p142 = scmp.eq.s32.totalorder %s32, 0
      %p143 = por %p141, %p142
      %s145 = sadd.s32 %s144, 1
      %p148 = scmp.eq.s32.totalorder %s26, 1
      %p149 = scmp.ne.s32.totalorder %s144, %s146
      %p150 = scmp.eq.s32.totalorder %s26, 0
      %p151 = por %p149, %p150
      %p152 = scmp.ne.s32.totalorder %s144, %s146
      %p153 = scmp.eq.s32.totalorder %s31, 1
      %p154 = por %p152, %p153
      %p155 = scmp.ne.s32.totalorder %s146, %s147
      %p156 = scmp.eq.s32.totalorder %s31, 0
      %p157 = por %p155, %p156
      %p158 = scmp.ne.s32.totalorder %s146, %s147
      %p159 = scmp.eq.s32.totalorder %s32, 1
      %p160 = por %p158, %p159
      %p162 = scmp.ne.s32.totalorder %s147, %s161
      %p163 = scmp.eq.s32.totalorder %s32, 0
      %p164 = por %p162, %p163
      %s166 = sadd.s32 %s165, 1
      %p169 = scmp.eq.s32.totalorder %s26, 1
      %p170 = scmp.ne.s32.totalorder %s165, %s167
      %p171 = scmp.eq.s32.totalorder %s26, 0
      %p172 = por %p170, %p171
      %p173 = scmp.ne.s32.totalorder %s165, %s167
      %p174 = scmp.eq.s32.totalorder %s31, 1
      %p175 = por %p173, %p174
      %p176 = scmp.ne.s32.totalorder %s167, %s168
      %p177 = scmp.eq.s32.totalorder %s31, 0
      %p178 = por %p176, %p177
      %p179 = scmp.ne.s32.totalorder %s167, %s168
      %p180 = scmp.eq.s32.totalorder %s32, 1
      %p181 = por %p179, %p180
      %p183 = scmp.ne.s32.totalorder %s168, %s182
      %p184 = scmp.eq.s32.totalorder %s32, 0
      %p185 = por %p183, %p184
      %s186 = ssub.s32 %s26, %s33
      %p187 = scmp.eq.s32.totalorder %s186, 0
      %s189 = sadd.s32 %s188, 1
      %s190 = scalar_select %p187, %s188, %s189
      %p193 = pneg %p187
      %p194 = scmp.eq.s32.totalorder %s26, 1
      %p195 = por %p193, %p194
      %p196 = scmp.ne.s32.totalorder %s188, %s191
      %p197 = scmp.eq.s32.totalorder %s26, 0
      %p198 = por %p196, %p197
      %p199 = scmp.ne.s32.totalorder %s188, %s191
      %p200 = scmp.eq.s32.totalorder %s31, 1
      %p201 = por %p199, %p200
      %p202 = scmp.ne.s32.totalorder %s191, %s192
      %p203 = scmp.eq.s32.totalorder %s31, 0
      %p204 = por %p202, %p203
      %p205 = scmp.ne.s32.totalorder %s191, %s192
      %p206 = scmp.eq.s32.totalorder %s32, 1
      %p207 = por %p205, %p206
      %p209 = scmp.ne.s32.totalorder %s192, %s208
      %p210 = scmp.eq.s32.totalorder %s32, 0
      %p211 = por %p209, %p210
      %s212 = ssub.s32 %s26, %s33
      %p213 = scmp.eq.s32.totalorder %s212, 0
      %s215 = sadd.s32 %s214, 1
      %s216 = scalar_select %p213, %s214, %s215
      %p219 = pneg %p213
      %p220 = scmp.eq.s32.totalorder %s26, 1
      %p221 = por %p219, %p220
      %p222 = scmp.ne.s32.totalorder %s214, %s217
      %p223 = scmp.eq.s32.totalorder %s26, 0
      %p224 = por %p222, %p223
      %p225 = scmp.ne.s32.totalorder %s214, %s217
      %p226 = scmp.eq.s32.totalorder %s31, 1
      %p227 = por %p225, %p226
      %p228 = scmp.ne.s32.totalorder %s217, %s218
      %p229 = scmp.eq.s32.totalorder %s31, 0
      %p230 = por %p228, %p229
      %p231 = scmp.ne.s32.totalorder %s217, %s218
      %p232 = scmp.eq.s32.totalorder %s32, 1
      %p233 = por %p231, %p232
      %p235 = scmp.ne.s32.totalorder %s218, %s234
      %p236 = scmp.eq.s32.totalorder %s32, 0
      %p237 = por %p235, %p236
      %p238 = scmp.le.s32.totalorder 1, %s26
      %p239 = scmp.lt.s32.totalorder %s26, 3
      %p240 = pnand %p238, %p239
      %p241 = pneg %p240
      // Predicated region
      $region9: #{tpu_custom_call.1} parent=5 // pred_check
        _
      $region10: #{tpu_custom_call.1} parent=5 // pred_check_branch
        %243 = sbr.rel (%p240) target = $region12
      $region11: #{tpu_custom_call.1} parent=5 // pred_region
        %s244 = ssub.s32 %s26, 1
        // Predicated region
        $region13: #{tpu_custom_call.1} parent=11 // pred_check
          %p245 = pneg %p73
        $region14: #{tpu_custom_call.1} parent=11 // pred_check_branch
          %247 = sbr.rel (%p245) target = $region16
        $region15: #{tpu_custom_call.1} parent=11 // pred_region
          %s249 = ssub.s32 1024, 1024
          %250 = vsyncadd [#allocation6], %s249
          %s251 = sshll.u32 [#allocation5], 4
          %s252 = int_to_ptr.vmem [resolvable:$true] %s251
          %257 = dma.hbm_to_vmem [thread:$0]  %s1, 1024, %s252, [#allocation6], 64, 64, 4
        $region16: #{tpu_custom_call.1} parent=11 // pred_fallthru
          _
        // Predicated region
        $region17: #{tpu_custom_call.1} parent=11 // pred_check
          %p258 = pneg %p94
        $region18: #{tpu_custom_call.1} parent=11 // pred_check_branch
          %260 = sbr.rel (%p258) target = $region20
        $region19: #{tpu_custom_call.1} parent=11 // pred_region
          _
        $region20: #{tpu_custom_call.1} parent=11 // pred_fallthru
          _
        // Predicated region
        $region21: #{tpu_custom_call.1} parent=11 // pred_check
          %p261 = pneg %p115
        $region22: #{tpu_custom_call.1} parent=11 // pred_check_branch
          %263 = sbr.rel (%p261) target = $region24
        $region23: #{tpu_custom_call.1} parent=11 // pred_region
          %s265 = ssub.s32 1024, 1024
          %266 = vsyncadd [#allocation6], %s265
          %s267 = sshll.u32 [#allocation7], 4
          %s268 = int_to_ptr.vmem [resolvable:$true] %s267
          %273 = dma.hbm_to_vmem [thread:$0]  %s3, 1024, %s268, [#allocation6], 64, 64, 4
        $region24: #{tpu_custom_call.1} parent=11 // pred_fallthru
          _
        // Predicated region
        $region25: #{tpu_custom_call.1} parent=11 // pred_check
          %p274 = pneg %p136
        $region26: #{tpu_custom_call.1} parent=11 // pred_check_branch
          %276 = sbr.rel (%p274) target = $region28
        $region27: #{tpu_custom_call.1} parent=11 // pred_region
          _
        $region28: #{tpu_custom_call.1} parent=11 // pred_fallthru
          _
        // Predicated region
        $region29: #{tpu_custom_call.1} parent=11 // pred_check
          %p277 = pneg %p157
        $region30: #{tpu_custom_call.1} parent=11 // pred_check_branch
          %279 = sbr.rel (%p277) target = $region32
        $region31: #{tpu_custom_call.1} parent=11 // pred_region
          %s281 = ssub.s32 2048, 2048
          %282 = vsyncadd [#allocation9], %s281
          %s283 = sshll.u32 [#allocation8], 4
          %s284 = int_to_ptr.vmem [resolvable:$true] %s283
          %289 = dma.hbm_to_vmem [thread:$0]  %s5, 2048, %s284, [#allocation9], 128, 128, 8
        $region32: #{tpu_custom_call.1} parent=11 // pred_fallthru
          _
        // Predicated region
        $region33: #{tpu_custom_call.1} parent=11 // pred_check
          %p290 = pneg %p178
        $region34: #{tpu_custom_call.1} parent=11 // pred_check_branch
          %292 = sbr.rel (%p290) target = $region36
        $region35: #{tpu_custom_call.1} parent=11 // pred_region
          _
        $region36: #{tpu_custom_call.1} parent=11 // pred_fallthru
          _
      $region12: #{tpu_custom_call.1} parent=5 // pred_fallthru
        _
      %p293 = scmp.lt.s32.totalorder %s26, 2
      // Predicated region
      $region37: #{tpu_custom_call.1} parent=5 // pred_check
        %p294 = pneg %p293
      $region38: #{tpu_custom_call.1} parent=5 // pred_check_branch
        %296 = sbr.rel (%p294) target = $region40
      $region39: #{tpu_custom_call.1} parent=5 // pred_region
        // Predicated region
        $region41: #{tpu_custom_call.1} parent=39 // pred_check
          %p297 = pneg %p46
        $region42: #{tpu_custom_call.1} parent=39 // pred_check_branch
          %299 = sbr.rel (%p297) target = $region44
        $region43: #{tpu_custom_call.1} parent=39 // pred_region
          %s300 = sand.u32 %s36, 1
          %s301 = scalar_lea.sflag [#allocation3], %s300
          %s302 = sand.u32 %s36, 1
          %s303 = smul.addr %s302, 8
          %s304 = scalar_lea.vmem [#allocation2], %s303
          %s306 = ssub.s32 128, 128
          %307 = vsyncadd %s301, %s306
          %s308 = smul.addr %s26, 128
          %s309 = scalar_lea.hbm %s0, %s308
          %s311 = sshll.u32 %s304, 4
          %s312 = int_to_ptr.vmem [resolvable:$true] %s311
          %314 = dma.hbm_to_vmem [thread:$0]  %s309, 128, %s312, %s301
        $region44: #{tpu_custom_call.1} parent=39 // pred_fallthru
          _
      $region40: #{tpu_custom_call.1} parent=5 // pred_fallthru
        _
      %p315 = scmp.le.s32.totalorder 1, %s26
      %p316 = scmp.lt.s32.totalorder %s26, 3
      %p317 = pnand %p315, %p316
      %p318 = pneg %p317
      // Predicated region
      $region45: #{tpu_custom_call.1} parent=5 // pred_check
        _
      $region46: #{tpu_custom_call.1} parent=5 // pred_check_branch
        %320 = sbr.rel (%p317) target = $region48
      $region47: #{tpu_custom_call.1} parent=5 // pred_region
        %s321 = ssub.s32 %s26, 1
        %s322 = sand.u32 %s39, 1
        %s323 = scalar_lea.sflag [#allocation3], %s322
        %s324 = sand.u32 %s39, 1
        %s325 = smul.addr %s324, 8
        %s326 = scalar_lea.vmem [#allocation2], %s325
        // Predicated region
        $region49: #{tpu_custom_call.1} parent=47 // pred_check
          %p327 = pneg %p52
        $region50: #{tpu_custom_call.1} parent=47 // pred_check_branch
          %329 = sbr.rel (%p327) target = $region52
        $region51: #{tpu_custom_call.1} parent=47 // pred_region
          %330 = dma.done %s323, 128
        $region52: #{tpu_custom_call.1} parent=47 // pred_fallthru
          _
        // Predicated region
        $region53: #{tpu_custom_call.1} parent=47 // pred_check
          %p331 = pneg %p73
        $region54: #{tpu_custom_call.1} parent=47 // pred_check_branch
          %333 = sbr.rel (%p331) target = $region56
        $region55: #{tpu_custom_call.1} parent=47 // pred_region
          %334 = dma.done [#allocation6], 1024
        $region56: #{tpu_custom_call.1} parent=47 // pred_fallthru
          _
        // Predicated region
        $region57: #{tpu_custom_call.1} parent=47 // pred_check
          %p335 = pneg %p115
        $region58: #{tpu_custom_call.1} parent=47 // pred_check_branch
          %337 = sbr.rel (%p335) target = $region60
        $region59: #{tpu_custom_call.1} parent=47 // pred_region
          %338 = dma.done [#allocation6], 1024
        $region60: #{tpu_custom_call.1} parent=47 // pred_fallthru
          _
        // Predicated region
        $region61: #{tpu_custom_call.1} parent=47 // pred_check
          %p339 = pneg %p157
        $region62: #{tpu_custom_call.1} parent=47 // pred_check_branch
          %341 = sbr.rel (%p339) target = $region64
        $region63: #{tpu_custom_call.1} parent=47 // pred_region
          %342 = dma.done [#allocation9], 2048
        $region64: #{tpu_custom_call.1} parent=47 // pred_fallthru
          _
        %s343 = sand.u32 %s39, 1
        %s344 = scalar_lea.sflag [#allocation3], %s343
        %s345 = sand.u32 %s39, 1
        %s346 = smul.addr %s345, 8
        %s347 = scalar_lea.vmem [#allocation2], %s346
        %p348 = pneg %p52
        %p349 = pneg %p49
        %p350 = pneg %p73
        %p351 = pneg %p70
        %p352 = pneg %p94
        %p353 = pneg %p91
        %p354 = pneg %p115
        %p355 = pneg %p112
        %p356 = pneg %p136
        %p357 = pneg %p133
        %p358 = pneg %p157
        %p359 = pneg %p154
        %p360 = pneg %p178
        %p361 = pneg %p175
        %p362 = pneg %p204
        %p363 = pneg %p201
        %s364 = sand.u32 %s191, 1
        %s365 = scalar_lea.sflag [#allocation4], %s364
        %s366 = sand.u32 %s191, 1
        %s367 = smul.addr %s366, 8
        %s368 = scalar_lea.vmem [#allocation10], %s367
        %p369 = pneg %p230
        %p370 = pneg %p227
        %s371 = sand.u32 %s217, 1
        %s372 = scalar_lea.sflag [#allocation12], %s371
        %s373 = sand.u32 %s217, 1
        %s374 = smul.addr %s373, 8
        %s375 = scalar_lea.vmem [#allocation11], %s374
        %v377 = vld [vmem:[%s326] sm:$0xff]
        %v378 = vpack.c.bf16 %v377, %v377
        %v379 = vld [vmem:[#allocation5] sm:$0xf]
        %v380 = vld [vmem:[#allocation5 + $0x4] sm:$0xf]
        %v381 = vld [vmem:[#allocation5 + $0x8] sm:$0xf]
        %v382 = vld [vmem:[#allocation5 + $0xc] sm:$0xf]
        %v383 = vld [vmem:[#allocation5 + $0x10] sm:$0xf]
        %v384 = vld [vmem:[#allocation5 + $0x14] sm:$0xf]
        %v385 = vld [vmem:[#allocation5 + $0x18] sm:$0xf]
        %v386 = vld [vmem:[#allocation5 + $0x1c] sm:$0xf]
        %v387 = vld [vmem:[#allocation5 + $0x20] sm:$0xf]
        %v388 = vld [vmem:[#allocation5 + $0x24] sm:$0xf]
        %v389 = vld [vmem:[#allocation5 + $0x28] sm:$0xf]
        %v390 = vld [vmem:[#allocation5 + $0x2c] sm:$0xf]
        %v391 = vld [vmem:[#allocation5 + $0x30] sm:$0xf]
        %v392 = vld [vmem:[#allocation5 + $0x34] sm:$0xf]
        %v393 = vld [vmem:[#allocation5 + $0x38] sm:$0xf]
        %v394 = vld [vmem:[#allocation5 + $0x3c] sm:$0xf]
        %v395 = vld [vmem:[%s2] sm:$0x1]
        %v397 = vlaneseq
        %v398 = vshrl.u32 %v397, 7
        %v399 = vsub.s32 0, %v398
        %v400 = vrot.slane %v395, %v399
        %v418 = vunpack.c.l.b16 %v379
        %v419 = vunpack.c.l.b16 %v380
        %v420 = vunpack.c.l.b16 %v381
        %v421 = vunpack.c.l.b16 %v382
        %v422 = vunpack.c.l.b16 %v383
        %v423 = vunpack.c.l.b16 %v384
        %v424 = vunpack.c.l.b16 %v385
        %v425 = vunpack.c.l.b16 %v386
        %v426 = vunpack.c.l.b16 %v387
        %v427 = vunpack.c.l.b16 %v388
        %v428 = vunpack.c.l.b16 %v389
        %v429 = vunpack.c.l.b16 %v390
        %v430 = vunpack.c.l.b16 %v391
        %v431 = vunpack.c.l.b16 %v392
        %v432 = vunpack.c.l.b16 %v393
        %v433 = vunpack.c.l.b16 %v394
        %v434 = vpack.c.b16 %v419, %v418
        %v435 = vpack.c.b16 %v421, %v420
        %v436 = vpack.c.b16 %v423, %v422
        %v437 = vpack.c.b16 %v425, %v424
        %v438 = vpack.c.b16 %v427, %v426
        %v439 = vpack.c.b16 %v429, %v428
        %v440 = vpack.c.b16 %v431, %v430
        %v441 = vpack.c.b16 %v433, %v432
        %450 = vmatprep.subr.bf16.mxu0 0
        %451 = vmatpush1.bf16.msra.mxu0 %v441
        %452 = vmatprep.subr.bf16.mxu0 0
        %453 = vmatpush1.bf16.msra.mxu0 %v440
        %454 = vmatprep.subr.bf16.mxu0 0
        %455 = vmatpush1.bf16.msra.mxu0 %v439
        %456 = vmatprep.subr.bf16.mxu0 0
        %457 = vmatpush1.bf16.msra.mxu0 %v438
        %458 = vmatprep.subr.bf16.mxu0 0
        %459 = vmatpush1.bf16.msra.mxu0 %v437
        %460 = vmatprep.subr.bf16.mxu0 0
        %461 = vmatpush1.bf16.msra.mxu0 %v436
        %462 = vmatprep.subr.bf16.mxu0 0
        %463 = vmatpush1.bf16.msra.mxu0 %v435
        %464 = vmatprep.subr.bf16.mxu0 0
        %465 = vmatpush1.bf16.msra.mxu0 %v434
        %466 = vmatprep.subr.bf16.mxu0 0
        %467 = vmatpush2.bf16.msra.mxu0 0
        %468 = vmatprep.subr.bf16.mxu0 0
        %469 = vmatpush2.bf16.msra.mxu0 0
        %470 = vmatprep.subr.bf16.mxu0 0
        %471 = vmatpush2.bf16.msra.mxu0 0
        %472 = vmatprep.subr.bf16.mxu0 0
        %473 = vmatpush2.bf16.msra.mxu0 0
        %474 = vmatprep.subr.bf16.mxu0 0
        %475 = vmatpush2.bf16.msra.mxu0 0
        %476 = vmatprep.subr.bf16.mxu0 0
        %477 = vmatpush2.bf16.msra.mxu0 0
        %478 = vmatprep.subr.bf16.mxu0 0
        %479 = vmatpush2.bf16.msra.mxu0 0
        %480 = vmatprep.subr.bf16.mxu0 0
        %481 = vmatpush2.bf16.msra.mxu0 0
        %482 = vmatprep.mubr.bf16.mxu0 0
        %483 = vmatmul.mubr.bf16.gmra.mxu0 %v378
        %v484 = vpop.f32.mrf.mxu0
        %v485 = vadd.f32 %v400, %v484
        %v486 = vpop.f32.mrf.mxu0
        %v487 = vpop.f32.mrf.mxu0
        %v488 = vpop.f32.mrf.mxu0
        %489 = vdwg.mxu0
        %v490 = vmax.f32 %v485, 0.0
        %v491 = vpack.c.bf16 %v490, %v490
        %v492 = vld [vmem:[#allocation7] sm:$0xf]
        %v493 = vld [vmem:[#allocation7 + $0x4] sm:$0xf]
        %v494 = vld [vmem:[#allocation7 + $0x8] sm:$0xf]
        %v495 = vld [vmem:[#allocation7 + $0xc] sm:$0xf]
        %v496 = vld [vmem:[#allocation7 + $0x10] sm:$0xf]
        %v497 = vld [vmem:[#allocation7 + $0x14] sm:$0xf]
        %v498 = vld [vmem:[#allocation7 + $0x18] sm:$0xf]
        %v499 = vld [vmem:[#allocation7 + $0x1c] sm:$0xf]
        %v500 = vld [vmem:[#allocation7 + $0x20] sm:$0xf]
        %v501 = vld [vmem:[#allocation7 + $0x24] sm:$0xf]
        %v502 = vld [vmem:[#allocation7 + $0x28] sm:$0xf]
        %v503 = vld [vmem:[#allocation7 + $0x2c] sm:$0xf]
        %v504 = vld [vmem:[#allocation7 + $0x30] sm:$0xf]
        %v505 = vld [vmem:[#allocation7 + $0x34] sm:$0xf]
        %v506 = vld [vmem:[#allocation7 + $0x38] sm:$0xf]
        %v507 = vld [vmem:[#allocation7 + $0x3c] sm:$0xf]
        %v508 = vld [vmem:[%s4] sm:$0x1]
        %v510 = vlaneseq
        %v511 = vshrl.u32 %v510, 7
        %v512 = vsub.s32 0, %v511
        %v513 = vrot.slane %v508, %v512
        %v531 = vunpack.c.l.b16 %v492
        %v532 = vunpack.c.l.b16 %v493
        %v533 = vunpack.c.l.b16 %v494
        %v534 = vunpack.c.l.b16 %v495
        %v535 = vunpack.c.l.b16 %v496
        %v536 = vunpack.c.l.b16 %v497
        %v537 = vunpack.c.l.b16 %v498
        %v538 = vunpack.c.l.b16 %v499
        %v539 = vunpack.c.l.b16 %v500
        %v540 = vunpack.c.l.b16 %v501
        %v541 = vunpack.c.l.b16 %v502
        %v542 = vunpack.c.l.b16 %v503
        %v543 = vunpack.c.l.b16 %v504
        %v544 = vunpack.c.l.b16 %v505
        %v545 = vunpack.c.l.b16 %v506
        %v546 = vunpack.c.l.b16 %v507
        %v547 = vpack.c.b16 %v532, %v531
        %v548 = vpack.c.b16 %v534, %v533
        %v549 = vpack.c.b16 %v536, %v535
        %v550 = vpack.c.b16 %v538, %v537
        %v551 = vpack.c.b16 %v540, %v539
        %v552 = vpack.c.b16 %v542, %v541
        %v553 = vpack.c.b16 %v544, %v543
        %v554 = vpack.c.b16 %v546, %v545
        %563 = vmatprep.subr.bf16.mxu0 0
        %564 = vmatpush1.bf16.msra.mxu0 %v554
        %565 = vmatprep.subr.bf16.mxu0 0
        %566 = vmatpush1.bf16.msra.mxu0 %v553
        %567 = vmatprep.subr.bf16.mxu0 0
        %568 = vmatpush1.bf16.msra.mxu0 %v552
        %569 = vmatprep.subr.bf16.mxu0 0
        %570 = vmatpush1.bf16.msra.mxu0 %v551
        %571 = vmatprep.subr.bf16.mxu0 0
        %572 = vmatpush1.bf16.msra.mxu0 %v550
        %573 = vmatprep.subr.bf16.mxu0 0
        %574 = vmatpush1.bf16.msra.mxu0 %v549
        %575 = vmatprep.subr.bf16.mxu0 0
        %576 = vmatpush1.bf16.msra.mxu0 %v548
        %577 = vmatprep.subr.bf16.mxu0 0
        %578 = vmatpush1.bf16.msra.mxu0 %v547
        %579 = vmatprep.subr.bf16.mxu0 0
        %580 = vmatpush2.bf16.msra.mxu0 0
        %581 = vmatprep.subr.bf16.mxu0 0
        %582 = vmatpush2.bf16.msra.mxu0 0
        %583 = vmatprep.subr.bf16.mxu0 0
        %584 = vmatpush2.bf16.msra.mxu0 0
        %585 = vmatprep.subr.bf16.mxu0 0
        %586 = vmatpush2.bf16.msra.mxu0 0
        %587 = vmatprep.subr.bf16.mxu0 0
        %588 = vmatpush2.bf16.msra.mxu0 0
        %589 = vmatprep.subr.bf16.mxu0 0
        %590 = vmatpush2.bf16.msra.mxu0 0
        %591 = vmatprep.subr.bf16.mxu0 0
        %592 = vmatpush2.bf16.msra.mxu0 0
        %593 = vmatprep.subr.bf16.mxu0 0
        %594 = vmatpush2.bf16.msra.mxu0 0
        %595 = vmatprep.mubr.bf16.mxu0 0
        %596 = vmatmul.mubr.bf16.gmra.mxu0 %v491
        %v597 = vpop.f32.mrf.mxu0
        %v598 = vadd.f32 %v513, %v597
        %v599 = vpop.f32.mrf.mxu0
        %v600 = vpop.f32.mrf.mxu0
        %v601 = vpop.f32.mrf.mxu0
        %602 = vdwg.mxu0
        %v603 = vmax.f32 %v598, 0.0
        %v604 = vpack.c.bf16 %v603, %v603
        %v605 = vld [vmem:[#allocation8] sm:$0xff]
        %v606 = vld [vmem:[#allocation8 + $0x8] sm:$0xff]
        %v607 = vld [vmem:[#allocation8 + $0x10] sm:$0xff]
        %v608 = vld [vmem:[#allocation8 + $0x18] sm:$0xff]
        %v609 = vld [vmem:[#allocation8 + $0x20] sm:$0xff]
        %v610 = vld [vmem:[#allocation8 + $0x28] sm:$0xff]
        %v611 = vld [vmem:[#allocation8 + $0x30] sm:$0xff]
        %v612 = vld [vmem:[#allocation8 + $0x38] sm:$0xff]
        %v613 = vld [vmem:[#allocation8 + $0x40] sm:$0xff]
        %v614 = vld [vmem:[#allocation8 + $0x48] sm:$0xff]
        %v615 = vld [vmem:[#allocation8 + $0x50] sm:$0xff]
        %v616 = vld [vmem:[#allocation8 + $0x58] sm:$0xff]
        %v617 = vld [vmem:[#allocation8 + $0x60] sm:$0xff]
        %v618 = vld [vmem:[#allocation8 + $0x68] sm:$0xff]
        %v619 = vld [vmem:[#allocation8 + $0x70] sm:$0xff]
        %v620 = vld [vmem:[#allocation8 + $0x78] sm:$0xff]
        %v621 = vld [vmem:[%s6] sm:$0x3]
        %v623 = vlaneseq
        %v624 = vshrl.u32 %v623, 7
        %v625 = vsub.s32 0, %v624
        %v626 = vrot.slane %v621, %v625
        %v627 = vlaneseq
        %v628 = vshrl.u32 %v627, 7
        %v629 = vsub.s32 1, %v628
        %v630 = vrot.slane %v621, %v629
        %v649 = vunpack.c.l.b16 %v605
        %v650 = vunpack.c.h.b16 %v605
        %v651 = vunpack.c.l.b16 %v606
        %v652 = vunpack.c.h.b16 %v606
        %v653 = vunpack.c.l.b16 %v607
        %v654 = vunpack.c.h.b16 %v607
        %v655 = vunpack.c.l.b16 %v608
        %v656 = vunpack.c.h.b16 %v608
        %v657 = vunpack.c.l.b16 %v609
        %v658 = vunpack.c.h.b16 %v609
        %v659 = vunpack.c.l.b16 %v610
        %v660 = vunpack.c.h.b16 %v610
        %v661 = vunpack.c.l.b16 %v611
        %v662 = vunpack.c.h.b16 %v611
        %v663 = vunpack.c.l.b16 %v612
        %v664 = vunpack.c.h.b16 %v612
        %v665 = vunpack.c.l.b16 %v613
        %v666 = vunpack.c.h.b16 %v613
        %v667 = vunpack.c.l.b16 %v614
        %v668 = vunpack.c.h.b16 %v614
        %v669 = vunpack.c.l.b16 %v615
        %v670 = vunpack.c.h.b16 %v615
        %v671 = vunpack.c.l.b16 %v616
        %v672 = vunpack.c.h.b16 %v616
        %v673 = vunpack.c.l.b16 %v617
        %v674 = vunpack.c.h.b16 %v617
        %v675 = vunpack.c.l.b16 %v618
        %v676 = vunpack.c.h.b16 %v618
        %v677 = vunpack.c.l.b16 %v619
        %v678 = vunpack.c.h.b16 %v619
        %v679 = vunpack.c.l.b16 %v620
        %v680 = vunpack.c.h.b16 %v620
        %v681 = vpack.c.b16 %v651, %v649
        %v682 = vpack.c.b16 %v652, %v650
        %v683 = vpack.c.b16 %v655, %v653
        %v684 = vpack.c.b16 %v656, %v654
        %v685 = vpack.c.b16 %v659, %v657
        %v686 = vpack.c.b16 %v660, %v658
        %v687 = vpack.c.b16 %v663, %v661
        %v688 = vpack.c.b16 %v664, %v662
        %v689 = vpack.c.b16 %v667, %v665
        %v690 = vpack.c.b16 %v668, %v666
        %v691 = vpack.c.b16 %v671, %v669
        %v692 = vpack.c.b16 %v672, %v670
        %v693 = vpack.c.b16 %v675, %v673
        %v694 = vpack.c.b16 %v676, %v674
        %v695 = vpack.c.b16 %v679, %v677
        %v696 = vpack.c.b16 %v680, %v678
        %713 = vmatprep.subr.bf16.mxu0 %v696
        %714 = vmatpush1.bf16.msra.mxu0 %v695
        %715 = vmatprep.subr.bf16.mxu0 %v694
        %716 = vmatpush1.bf16.msra.mxu0 %v693
        %717 = vmatprep.subr.bf16.mxu0 %v692
        %718 = vmatpush1.bf16.msra.mxu0 %v691
        %719 = vmatprep.subr.bf16.mxu0 %v690
        %720 = vmatpush1.bf16.msra.mxu0 %v689
        %721 = vmatprep.subr.bf16.mxu0 %v688
        %722 = vmatpush1.bf16.msra.mxu0 %v687
        %723 = vmatprep.subr.bf16.mxu0 %v686
        %724 = vmatpush1.bf16.msra.mxu0 %v685
        %725 = vmatprep.subr.bf16.mxu0 %v684
        %726 = vmatpush1.bf16.msra.mxu0 %v683
        %727 = vmatprep.subr.bf16.mxu0 %v682
        %728 = vmatpush1.bf16.msra.mxu0 %v681
        %729 = vmatprep.subr.bf16.mxu0 0
        %730 = vmatpush2.bf16.msra.mxu0 0
        %731 = vmatprep.subr.bf16.mxu0 0
        %732 = vmatpush2.bf16.msra.mxu0 0
        %733 = vmatprep.subr.bf16.mxu0 0
        %734 = vmatpush2.bf16.msra.mxu0 0
        %735 = vmatprep.subr.bf16.mxu0 0
        %736 = vmatpush2.bf16.msra.mxu0 0
        %737 = vmatprep.subr.bf16.mxu0 0
        %738 = vmatpush2.bf16.msra.mxu0 0
        %739 = vmatprep.subr.bf16.mxu0 0
        %740 = vmatpush2.bf16.msra.mxu0 0
        %741 = vmatprep.subr.bf16.mxu0 0
        %742 = vmatpush2.bf16.msra.mxu0 0
        %743 = vmatprep.subr.bf16.mxu0 0
        %744 = vmatpush2.bf16.msra.mxu0 0
        %745 = vmatprep.mubr.bf16.mxu0 0
        %746 = vmatmul.mubr.bf16.gmra.mxu0 %v604
        %v747 = vpop.f32.mrf.mxu0
        %v748 = vadd.f32 %v626, %v747
        %v749 = vpop.f32.mrf.mxu0
        %v750 = vadd.f32 %v630, %v749
        %v751 = vpop.f32.mrf.mxu0
        %v752 = vpop.f32.mrf.mxu0
        %753 = vdwg.mxu0
        %v754 = vsub.f32 %v377, %v748
        %v755 = vsub.f32 0.0, %v750
        %v756 = vmul.f32 %v755, 1.442695
        %v757 = vpow.pop %v756
        %v758 = vmul.f32 %v754, %v757
        %759 = vst [vmem:[%s368] sm:$0xff] %v758
        %760 = vadd.xlane.f32.xlu0 %v750
        %v761 = vpop.xlane.xlu0 %760
        %v762 = vsub.f32 0.0, %v761
        %763 = vst [vmem:[%s375] sm:$0xff] %v762
        %s764 = sand.u32 %s191, 1
        %s765 = scalar_lea.sflag [#allocation4], %s764
        %s766 = sand.u32 %s191, 1
        %s767 = smul.addr %s766, 8
        %s768 = scalar_lea.vmem [#allocation10], %s767
        %s769 = sand.u32 %s217, 1
        %s770 = scalar_lea.sflag [#allocation12], %s769
        %s771 = sand.u32 %s217, 1
        %s772 = smul.addr %s771, 8
        %s773 = scalar_lea.vmem [#allocation11], %s772
        // Predicated region
        $region65: #{tpu_custom_call.1} parent=47 // pred_check
          %p774 = pneg %p201
        $region66: #{tpu_custom_call.1} parent=47 // pred_check_branch
          %776 = sbr.rel (%p774) target = $region68
        $region67: #{tpu_custom_call.1} parent=47 // pred_region
          %s778 = ssub.s32 128, 128
          %779 = vsyncadd %s765, %s778
          %s780 = smul.addr %s31, 128
          %s781 = scalar_lea.hbm %s7, %s780
          %s783 = sshll.u32 %s768, 4
          %s784 = int_to_ptr.vmem [resolvable:$true] %s783
          %786 = dma.vmem_to_hbm [thread:$0]  %s784, 128, %s781, %s765
        $region68: #{tpu_custom_call.1} parent=47 // pred_fallthru
          _
        // Predicated region
        $region69: #{tpu_custom_call.1} parent=47 // pred_check
          %p787 = pneg %p227
        $region70: #{tpu_custom_call.1} parent=47 // pred_check_branch
          %789 = sbr.rel (%p787) target = $region72
        $region71: #{tpu_custom_call.1} parent=47 // pred_region
          %s791 = ssub.s32 128, 128
          %792 = vsyncadd %s770, %s791
          %s793 = smul.addr %s31, 128
          %s794 = scalar_lea.hbm %s8, %s793
          %s796 = sshll.u32 %s773, 4
          %s797 = int_to_ptr.vmem [resolvable:$true] %s796
          %799 = dma.vmem_to_hbm [thread:$0]  %s797, 128, %s794, %s770
        $region72: #{tpu_custom_call.1} parent=47 // pred_fallthru
          _
      $region48: #{tpu_custom_call.1} parent=5 // pred_fallthru
        _
      %p800 = scmp.le.s32.totalorder 2, %s26
      // Predicated region
      $region73: #{tpu_custom_call.1} parent=5 // pred_check
        %p801 = pneg %p800
      $region74: #{tpu_custom_call.1} parent=5 // pred_check_branch
        %803 = sbr.rel (%p801) target = $region76
      $region75: #{tpu_custom_call.1} parent=5 // pred_region
        %s804 = ssub.s32 %s26, 2
        // Predicated region
        $region77: #{tpu_custom_call.1} parent=75 // pred_check
          %p805 = pneg %p207
        $region78: #{tpu_custom_call.1} parent=75 // pred_check_branch
          %807 = sbr.rel (%p805) target = $region80
        $region79: #{tpu_custom_call.1} parent=75 // pred_region
          %s808 = sand.u32 %s192, 1
          %s809 = scalar_lea.sflag [#allocation4], %s808
          %s810 = sand.u32 %s192, 1
          %s811 = smul.addr %s810, 8
          %s812 = scalar_lea.vmem [#allocation10], %s811
          %813 = dma.done %s809, 128
        $region80: #{tpu_custom_call.1} parent=75 // pred_fallthru
          _
        // Predicated region
        $region81: #{tpu_custom_call.1} parent=75 // pred_check
          %p814 = pneg %p233
        $region82: #{tpu_custom_call.1} parent=75 // pred_check_branch
          %816 = sbr.rel (%p814) target = $region84
        $region83: #{tpu_custom_call.1} parent=75 // pred_region
          %s817 = sand.u32 %s218, 1
          %s818 = scalar_lea.sflag [#allocation12], %s817
          %s819 = sand.u32 %s218, 1
          %s820 = smul.addr %s819, 8
          %s821 = scalar_lea.vmem [#allocation11], %s820
          %822 = dma.done %s818, 128
        $region84: #{tpu_custom_call.1} parent=75 // pred_fallthru
          _
      $region76: #{tpu_custom_call.1} parent=5 // pred_fallthru
        _
    $region6: #{tpu_custom_call.1} parent=1 // loop_footer
      %s30 = sadd.s32 1, %s26
    $region7: #{tpu_custom_call.1} parent=1 // loop_footer_branch
      %25 = sbr.rel target = $region3
    $region8: #{tpu_custom_call.1} parent=1 // loop_exit
      _
    %823 = vsyncpa [#allocation3], 1
    %s824 = scalar_lea.sflag [#allocation3], 1
    %825 = vsyncpa %s824, 1
    %826 = vsyncpa [#allocation6], 1
    %827 = vsyncpa [#allocation9], 1
    %828 = vsyncpa [#allocation4], 1
    %s829 = scalar_lea.sflag [#allocation4], 1
    %830 = vsyncpa %s829, 1
    %831 = vsyncpa [#allocation12], 1
    %s832 = scalar_lea.sflag [#allocation12], 1
    %833 = vsyncpa %s832, 1

// kernel: tpu_custom_call.1
$region0: #{tpu_custom_call.1}
  #allocation0 [shape = 'u32[]', space=smem, size = 0x4, offset = 0x4, fixed_abs, tag = 'smem constant byte address 0x4 - core index']
  #allocation1 [shape = 'u32[144,128]{1,0:T(1,128)}', space=vmem, size = 0x12000, scoped, tag = 'internal scratch']
  %s0 = inlined_call_operand.hbm [shape: f32[16,128], index: 0, kind: input, shape index: {}]
  %s1 = inlined_call_operand.hbm [shape: bf16[128,128], index: 1, kind: input, shape index: {}]
  %s2 = inlined_call_operand.vmem [shape: f32[1,128], index: 2, kind: input, shape index: {}]
  %s3 = inlined_call_operand.hbm [shape: bf16[128,128], index: 3, kind: input, shape index: {}]
  %s4 = inlined_call_operand.vmem [shape: f32[1,128], index: 4, kind: input, shape index: {}]
  %s5 = inlined_call_operand.hbm [shape: bf16[128,256], index: 5, kind: input, shape index: {}]
  %s6 = inlined_call_operand.vmem [shape: f32[1,256], index: 6, kind: input, shape index: {}]
  %s7 = inlined_call_operand.hbm [shape: f32[16,128], index: 7, kind: output, shape index: {0}]
  %s8 = inlined_call_operand.hbm [shape: f32[16,128], index: 8, kind: output, shape index: {1}]
  %9 = xla_tuple %s7, %s8
  %s10 = sld [smem:[#allocation0]]
  $region85: #{tpu_custom_call.1} parent=0
    _
  %s12 = ssub.s32 1, %s10
  %s13 = scalar_select 0, %s12, %s10
  $region1: #{tpu_custom_call.1} parent=0
    #allocation2 [shape = 'u8[8192]{0}', space=vmem, size = 0x2000, scoped, tag = 'input window, operand 0']
    #allocation3 [shape = 's32[2]{0}', space=sflag, size = 0x8, scoped, tag = 'scoped memory for tpu_custom_call.1']
    #allocation4 [shape = 's32[2]{0}', space=sflag, size = 0x8, scoped, tag = 'scoped memory for tpu_custom_call.1']
    #allocation5 [shape = 'u8[32768]{0}', space=vmem, size = 0x8000, scoped, tag = 'input window, operand 1, single buffered']
    #allocation6 [shape = 's32[1]{0}', space=sflag, size = 0x4, scoped, tag = 'scoped memory for tpu_custom_call.1']
    #allocation7 [shape = 'u8[32768]{0}', space=vmem, size = 0x8000, scoped, tag = 'input window, operand 3, single buffered']
    #allocation8 [shape = 'u8[65536]{0}', space=vmem, size = 0x10000, scoped, tag = 'input window, operand 5, single buffered']
    #allocation9 [shape = 's32[1]{0}', space=sflag, size = 0x4, scoped, tag = 'scoped memory for tpu_custom_call.1']
    #allocation10 [shape = 'u8[8192]{0}', space=vmem, size = 0x2000, scoped, tag = 'output window, operand 0']
    #allocation11 [shape = 'u8[8192]{0}', space=vmem, size = 0x2000, scoped, tag = 'output window, operand 1']
    #allocation12 [shape = 's32[2]{0}', space=sflag, size = 0x8, scoped, tag = 'scoped memory for tpu_custom_call.1']
    %14 = vsyncpa [#allocation3], 0
    %s15 = scalar_lea.sflag [#allocation3], 1
    %16 = vsyncpa %s15, 0
    %17 = vsyncpa [#allocation6], 0
    %18 = vsyncpa [#allocation9], 0
    %19 = vsyncpa [#allocation4], 0
    %s20 = scalar_lea.sflag [#allocation4], 1
    %21 = vsyncpa %s20, 0
    %22 = vsyncpa [#allocation12], 0
    %s23 = scalar_lea.sflag [#allocation12], 1
    %24 = vsyncpa %s23, 0
    loop: start=0, step=1, limit=4
    $region2: #{tpu_custom_call.1} parent=1 // loop_pre_header
      _
    $region3: #{tpu_custom_call.1} parent=1 // loop_header
      %s26 = sphi 0, %s30
      %p27 = scmp.ge.s32.totalorder %s26, 4
      %s36 = sphi 0, %s38
      %s39 = sphi 0, %s36
      %s40 = sphi 0, %s39
      %s56 = sphi 0, %s40
      %s60 = sphi 0, %s60
      %s62 = sphi 0, %s60
      %s63 = sphi 0, %s62
      %s77 = sphi 0, %s63
      %s81 = sphi 0, %s81
      %s83 = sphi 0, %s81
      %s84 = sphi 0, %s83
      %s98 = sphi 0, %s84
      %s102 = sphi 0, %s102
      %s104 = sphi 0, %s102
      %s105 = sphi 0, %s104
      %s119 = sphi 0, %s105
      %s123 = sphi 0, %s123
      %s125 = sphi 0, %s123
      %s126 = sphi 0, %s125
      %s140 = sphi 0, %s126
      %s144 = sphi 0, %s144
      %s146 = sphi 0, %s144
      %s147 = sphi 0, %s146
      %s161 = sphi 0, %s147
      %s165 = sphi 0, %s165
      %s167 = sphi 0, %s165
      %s168 = sphi 0, %s167
      %s182 = sphi 0, %s168
      %s188 = sphi 0, %s190
      %s191 = sphi 0, %s188
      %s192 = sphi 0, %s191
      %s208 = sphi 0, %s192
      %s214 = sphi 0, %s216
      %s217 = sphi 0, %s214
      %s218 = sphi 0, %s217
      %s234 = sphi 0, %s218
    $region4: #{tpu_custom_call.1} parent=1 // loop_header_branch
      %29 = sbr.rel (%p27) target = $region8
    $region5: #{tpu_custom_call.1} parent=1 // loop_body
      %s31 = ssub.s32 %s26, 1
      %s32 = ssub.s32 %s26, 2
      %s33 = sadd.s32 %s26, 1
      %s34 = ssub.s32 %s26, %s33
      %p35 = scmp.eq.s32.totalorder %s34, 0
      %s37 = sadd.s32 %s36, 1
      %s38 = scalar_select %p35, %s36, %s37
      %p41 = pneg %p35
      %p42 = scmp.eq.s32.totalorder %s26, 1
      %p43 = por %p41, %p42
      %p44 = scmp.ne.s32.totalorder %s36, %s39
      %p45 = scmp.eq.s32.totalorder %s26, 0
      %p46 = por %p44, %p45
      %p47 = scmp.ne.s32.totalorder %s36, %s39
      %p48 = scmp.eq.s32.totalorder %s31, 1
      %p49 = por %p47, %p48
      %p50 = scmp.ne.s32.totalorder %s39, %s40
      %p51 = scmp.eq.s32.totalorder %s31, 0
      %p52 = por %p50, %p51
      %p53 = scmp.ne.s32.totalorder %s39, %s40
      %p54 = scmp.eq.s32.totalorder %s32, 1
      %p55 = por %p53, %p54
      %p57 = scmp.ne.s32.totalorder %s40, %s56
      %p58 = scmp.eq.s32.totalorder %s32, 0
      %p59 = por %p57, %p58
      %s61 = sadd.s32 %s60, 1
      %p64 = scmp.eq.s32.totalorder %s26, 1
      %p65 = scmp.ne.s32.totalorder %s60, %s62
      %p66 = scmp.eq.s32.totalorder %s26, 0
      %p67 = por %p65, %p66
      %p68 = scmp.ne.s32.totalorder %s60, %s62
      %p69 = scmp.eq.s32.totalorder %s31, 1
      %p70 = por %p68, %p69
      %p71 = scmp.ne.s32.totalorder %s62, %s63
      %p72 = scmp.eq.s32.totalorder %s31, 0
      %p73 = por %p71, %p72
      %p74 = scmp.ne.s32.totalorder %s62, %s63
      %p75 = scmp.eq.s32.totalorder %s32, 1
      %p76 = por %p74, %p75
      %p78 = scmp.ne.s32.totalorder %s63, %s77
      %p79 = scmp.eq.s32.totalorder %s32, 0
      %p80 = por %p78, %p79
      %s82 = sadd.s32 %s81, 1
      %p85 = scmp.eq.s32.totalorder %s26, 1
      %p86 = scmp.ne.s32.totalorder %s81, %s83
      %p87 = scmp.eq.s32.totalorder %s26, 0
      %p88 = por %p86, %p87
      %p89 = scmp.ne.s32.totalorder %s81, %s83
      %p90 = scmp.eq.s32.totalorder %s31, 1
      %p91 = por %p89, %p90
      %p92 = scmp.ne.s32.totalorder %s83, %s84
      %p93 = scmp.eq.s32.totalorder %s31, 0
      %p94 = por %p92, %p93
      %p95 = scmp.ne.s32.totalorder %s83, %s84
      %p96 = scmp.eq.s32.totalorder %s32, 1
      %p97 = por %p95, %p96
      %p99 = scmp.ne.s32.totalorder %s84, %s98
      %p100 = scmp.eq.s32.totalorder %s32, 0
      %p101 = por %p99, %p100
      %s103 = sadd.s32 %s102, 1
      %p106 = scmp.eq.s32.totalorder %s26, 1
      %p107 = scmp.ne.s32.totalorder %s102, %s104
      %p108 = scmp.eq.s32.totalorder %s26, 0
      %p109 = por %p107, %p108
      %p110 = scmp.ne.s32.totalorder %s102, %s104
      %p111 = scmp.eq.s32.totalorder %s31, 1
      %p112 = por %p110, %p111
      %p113 = scmp.ne.s32.totalorder %s104, %s105
      %p114 = scmp.eq.s32.totalorder %s31, 0
      %p115 = por %p113, %p114
      %p116 = scmp.ne.s32.totalorder %s104, %s105
      %p117 = scmp.eq.s32.totalorder %s32, 1
      %p118 = por %p116, %p117
      %p120 = scmp.ne.s32.totalorder %s105, %s119
      %p121 = scmp.eq.s32.totalorder %s32, 0
      %p122 = por %p120, %p121
      %s124 = sadd.s32 %s123, 1
      %p127 = scmp.eq.s32.totalorder %s26, 1
      %p128 = scmp.ne.s32.totalorder %s123, %s125
      %p129 = scmp.eq.s32.totalorder %s26, 0
      %p130 = por %p128, %p129
      %p131 = scmp.ne.s32.totalorder %s123, %s125
      %p132 = scmp.eq.s32.totalorder %s31, 1
      %p133 = por %p131, %p132
      %p134 = scmp.ne.s32.totalorder %s125, %s126
      %p135 = scmp.eq.s32.totalorder %s31, 0
      %p136 = por %p134, %p135
      %p137 = scmp.ne.s32.totalorder %s125, %s126
      %p138 = scmp.eq.s32.totalorder %s32, 1
      %p139 = por %p137, %p138
      %p141 = scmp.ne.s32.totalorder %s126, %s140
      %p142 = scmp.eq.s32.totalorder %s32, 0
      %p143 = por %p141, %p142
      %s145 = sadd.s32 %s144, 1
      %p148 = scmp.eq.s32.totalorder %s26, 1
      %p149 = scmp.ne.s32.totalorder %s144, %s146
      %p150 = scmp.eq.s32.totalorder %s26, 0
      %p151 = por %p149, %p150
      %p152 = scmp.ne.s32.totalorder %s144, %s146
      %p153 = scmp.eq.s32.totalorder %s31, 1
      %p154 = por %p152, %p153
      %p155 = scmp.ne.s32.totalorder %s146, %s147
      %p156 = scmp.eq.s32.totalorder %s31, 0
      %p157 = por %p155, %p156
      %p158 = scmp.ne.s32.totalorder %s146, %s147
      %p159 = scmp.eq.s32.totalorder %s32, 1
      %p160 = por %p158, %p159
      %p162 = scmp.ne.s32.totalorder %s147, %s161
      %p163 = scmp.eq.s32.totalorder %s32, 0
      %p164 = por %p162, %p163
      %s166 = sadd.s32 %s165, 1
      %p169 = scmp.eq.s32.totalorder %s26, 1
      %p170 = scmp.ne.s32.totalorder %s165, %s167
      %p171 = scmp.eq.s32.totalorder %s26, 0
      %p172 = por %p170, %p171
      %p173 = scmp.ne.s32.totalorder %s165, %s167
      %p174 = scmp.eq.s32.totalorder %s31, 1
      %p175 = por %p173, %p174
      %p176 = scmp.ne.s32.totalorder %s167, %s168
      %p177 = scmp.eq.s32.totalorder %s31, 0
      %p178 = por %p176, %p177
      %p179 = scmp.ne.s32.totalorder %s167, %s168
      %p180 = scmp.eq.s32.totalorder %s32, 1
      %p181 = por %p179, %p180
      %p183 = scmp.ne.s32.totalorder %s168, %s182
      %p184 = scmp.eq.s32.totalorder %s32, 0
      %p185 = por %p183, %p184
      %s186 = ssub.s32 %s26, %s33
      %p187 = scmp.eq.s32.totalorder %s186, 0
      %s189 = sadd.s32 %s188, 1
      %s190 = scalar_select %p187, %s188, %s189
      %p193 = pneg %p187
      %p194 = scmp.eq.s32.totalorder %s26, 1
      %p195 = por %p193, %p194
      %p196 = scmp.ne.s32.totalorder %s188, %s191
      %p197 = scmp.eq.s32.totalorder %s26, 0
      %p198 = por %p196, %p197
      %p199 = scmp.ne.s32.totalorder %s188, %s191
      %p200 = scmp.eq.s32.totalorder %s31, 1
      %p201 = por %p199, %p200
      %p202 = scmp.ne.s32.totalorder %s191, %s192
      %p203 = scmp.eq.s32.totalorder %s31, 0
      %p204 = por %p202, %p203
      %p205 = scmp.ne.s32.totalorder %s191, %s192
      %p206 = scmp.eq.s32.totalorder %s32, 1
      %p207 = por %p205, %p206
      %p209 = scmp.ne.s32.totalorder %s192, %s208
      %p210 = scmp.eq.s32.totalorder %s32, 0
      %p211 = por %p209, %p210
      %s212 = ssub.s32 %s26, %s33
      %p213 = scmp.eq.s32.totalorder %s212, 0
      %s215 = sadd.s32 %s214, 1
      %s216 = scalar_select %p213, %s214, %s215
      %p219 = pneg %p213
      %p220 = scmp.eq.s32.totalorder %s26, 1
      %p221 = por %p219, %p220
      %p222 = scmp.ne.s32.totalorder %s214, %s217
      %p223 = scmp.eq.s32.totalorder %s26, 0
      %p224 = por %p222, %p223
      %p225 = scmp.ne.s32.totalorder %s214, %s217
      %p226 = scmp.eq.s32.totalorder %s31, 1
      %p227 = por %p225, %p226
      %p228 = scmp.ne.s32.totalorder %s217, %s218
      %p229 = scmp.eq.s32.totalorder %s31, 0
      %p230 = por %p228, %p229
      %p231 = scmp.ne.s32.totalorder %s217, %s218
      %p232 = scmp.eq.s32.totalorder %s32, 1
      %p233 = por %p231, %p232
      %p235 = scmp.ne.s32.totalorder %s218, %s234
      %p236 = scmp.eq.s32.totalorder %s32, 0
      %p237 = por %p235, %p236
      %p238 = scmp.le.s32.totalorder 1, %s26
      %p239 = scmp.lt.s32.totalorder %s26, 3
      %p240 = pnand %p238, %p239
      %p241 = pneg %p240
      // Predicated region
      $region9: #{tpu_custom_call.1} parent=5 // pred_check
        _
      $region10: #{tpu_custom_call.1} parent=5 // pred_check_branch
        %243 = sbr.rel (%p240) target = $region12
      $region11: #{tpu_custom_call.1} parent=5 // pred_region
        %s244 = ssub.s32 %s26, 1
        // Predicated region
        $region13: #{tpu_custom_call.1} parent=11 // pred_check
          %p245 = pneg %p73
        $region14: #{tpu_custom_call.1} parent=11 // pred_check_branch
          %247 = sbr.rel (%p245) target = $region16
        $region15: #{tpu_custom_call.1} parent=11 // pred_region
          %s249 = ssub.s32 1024, 1024
          %250 = vsyncadd [#allocation6], %s249
          %s251 = sshll.u32 [#allocation5], 4
          %s252 = int_to_ptr.vmem [resolvable:$true] %s251
          %257 = dma.hbm_to_vmem [thread:$0]  %s1, 1024, %s252, [#allocation6], 64, 64, 4
        $region16: #{tpu_custom_call.1} parent=11 // pred_fallthru
          _
        // Predicated region
        $region17: #{tpu_custom_call.1} parent=11 // pred_check
          %p258 = pneg %p94
        $region18: #{tpu_custom_call.1} parent=11 // pred_check_branch
          %260 = sbr.rel (%p258) target = $region20
        $region19: #{tpu_custom_call.1} parent=11 // pred_region
          _
        $region20: #{tpu_custom_call.1} parent=11 // pred_fallthru
          _
        // Predicated region
        $region21: #{tpu_custom_call.1} parent=11 // pred_check
          %p261 = pneg %p115
        $region22: #{tpu_custom_call.1} parent=11 // pred_check_branch
          %263 = sbr.rel (%p261) target = $region24
        $region23: #{tpu_custom_call.1} parent=11 // pred_region
          %s265 = ssub.s32 1024, 1024
          %266 = vsyncadd [#allocation6], %s265
          %s267 = sshll.u32 [#allocation7], 4
          %s268 = int_to_ptr.vmem [resolvable:$true] %s267
          %273 = dma.hbm_to_vmem [thread:$0]  %s3, 1024, %s268, [#allocation6], 64, 64, 4
        $region24: #{tpu_custom_call.1} parent=11 // pred_fallthru
          _
        // Predicated region
        $region25: #{tpu_custom_call.1} parent=11 // pred_check
          %p274 = pneg %p136
        $region26: #{tpu_custom_call.1} parent=11 // pred_check_branch
          %276 = sbr.rel (%p274) target = $region28
        $region27: #{tpu_custom_call.1} parent=11 // pred_region
          _
        $region28: #{tpu_custom_call.1} parent=11 // pred_fallthru
          _
        // Predicated region
        $region29: #{tpu_custom_call.1} parent=11 // pred_check
          %p277 = pneg %p157
        $region30: #{tpu_custom_call.1} parent=11 // pred_check_branch
          %279 = sbr.rel (%p277) target = $region32
        $region31: #{tpu_custom_call.1} parent=11 // pred_region
          %s281 = ssub.s32 2048, 2048
          %282 = vsyncadd [#allocation9], %s281
          %s283 = sshll.u32 [#allocation8], 4
          %s284 = int_to_ptr.vmem [resolvable:$true] %s283
          %289 = dma.hbm_to_vmem [thread:$0]  %s5, 2048, %s284, [#allocation9], 128, 128, 8
        $region32: #{tpu_custom_call.1} parent=11 // pred_fallthru
          _
        // Predicated region
        $region33: #{tpu_custom_call.1} parent=11 // pred_check
          %p290 = pneg %p178
        $region34: #{tpu_custom_call.1} parent=11 // pred_check_branch
          %292 = sbr.rel (%p290) target = $region36
        $region35: #{tpu_custom_call.1} parent=11 // pred_region
          _
        $region36: #{tpu_custom_call.1} parent=11 // pred_fallthru
          _
      $region12: #{tpu_custom_call.1} parent=5 // pred_fallthru
        _
      %p293 = scmp.lt.s32.totalorder %s26, 2
      // Predicated region
      $region37: #{tpu_custom_call.1} parent=5 // pred_check
        %p294 = pneg %p293
      $region38: #{tpu_custom_call.1} parent=5 // pred_check_branch
        %296 = sbr.rel (%p294) target = $region40
      $region39: #{tpu_custom_call.1} parent=5 // pred_region
        // Predicated region
        $region41: #{tpu_custom_call.1} parent=39 // pred_check
          %p297 = pneg %p46
        $region42: #{tpu_custom_call.1} parent=39 // pred_check_branch
          %299 = sbr.rel (%p297) target = $region44
        $region43: #{tpu_custom_call.1} parent=39 // pred_region
          %s300 = sand.u32 %s36, 1
          %s301 = scalar_lea.sflag [#allocation3], %s300
          %s302 = sand.u32 %s36, 1
          %s303 = smul.addr %s302, 8
          %s304 = scalar_lea.vmem [#allocation2], %s303
          %s306 = ssub.s32 128, 128
          %307 = vsyncadd %s301, %s306
          %s308 = smul.addr %s26, 128
          %s309 = scalar_lea.hbm %s0, %s308
          %s311 = sshll.u32 %s304, 4
          %s312 = int_to_ptr.vmem [resolvable:$true] %s311
          %314 = dma.hbm_to_vmem [thread:$0]  %s309, 128, %s312, %s301
        $region44: #{tpu_custom_call.1} parent=39 // pred_fallthru
          _
      $region40: #{tpu_custom_call.1} parent=5 // pred_fallthru
        _
      %p315 = scmp.le.s32.totalorder 1, %s26
      %p316 = scmp.lt.s32.totalorder %s26, 3
      %p317 = pnand %p315, %p316
      %p318 = pneg %p317
      // Predicated region
      $region45: #{tpu_custom_call.1} parent=5 // pred_check
        _
      $region46: #{tpu_custom_call.1} parent=5 // pred_check_branch
        %320 = sbr.rel (%p317) target = $region48
      $region47: #{tpu_custom_call.1} parent=5 // pred_region
        %s321 = ssub.s32 %s26, 1
        %s322 = sand.u32 %s39, 1
        %s323 = scalar_lea.sflag [#allocation3], %s322
        %s324 = sand.u32 %s39, 1
        %s325 = smul.addr %s324, 8
        %s326 = scalar_lea.vmem [#allocation2], %s325
        // Predicated region
        $region49: #{tpu_custom_call.1} parent=47 // pred_check
          %p327 = pneg %p52
        $region50: #{tpu_custom_call.1} parent=47 // pred_check_branch
          %329 = sbr.rel (%p327) target = $region52
        $region51: #{tpu_custom_call.1} parent=47 // pred_region
          %330 = dma.done %s323, 128
        $region52: #{tpu_custom_call.1} parent=47 // pred_fallthru
          _
        // Predicated region
        $region53: #{tpu_custom_call.1} parent=47 // pred_check
          %p331 = pneg %p73
        $region54: #{tpu_custom_call.1} parent=47 // pred_check_branch
          %333 = sbr.rel (%p331) target = $region56
        $region55: #{tpu_custom_call.1} parent=47 // pred_region
          %334 = dma.done [#allocation6], 1024
        $region56: #{tpu_custom_call.1} parent=47 // pred_fallthru
          _
        // Predicated region
        $region57: #{tpu_custom_call.1} parent=47 // pred_check
          %p335 = pneg %p115
        $region58: #{tpu_custom_call.1} parent=47 // pred_check_branch
          %337 = sbr.rel (%p335) target = $region60
        $region59: #{tpu_custom_call.1} parent=47 // pred_region
          %338 = dma.done [#allocation6], 1024
        $region60: #{tpu_custom_call.1} parent=47 // pred_fallthru
          _
        // Predicated region
        $region61: #{tpu_custom_call.1} parent=47 // pred_check
          %p339 = pneg %p157
        $region62: #{tpu_custom_call.1} parent=47 // pred_check_branch
          %341 = sbr.rel (%p339) target = $region64
        $region63: #{tpu_custom_call.1} parent=47 // pred_region
          %342 = dma.done [#allocation9], 2048
        $region64: #{tpu_custom_call.1} parent=47 // pred_fallthru
          _
        %s343 = sand.u32 %s39, 1
        %s344 = scalar_lea.sflag [#allocation3], %s343
        %s345 = sand.u32 %s39, 1
        %s346 = smul.addr %s345, 8
        %s347 = scalar_lea.vmem [#allocation2], %s346
        %p348 = pneg %p52
        %p349 = pneg %p49
        %p350 = pneg %p73
        %p351 = pneg %p70
        %p352 = pneg %p94
        %p353 = pneg %p91
        %p354 = pneg %p115
        %p355 = pneg %p112
        %p356 = pneg %p136
        %p357 = pneg %p133
        %p358 = pneg %p157
        %p359 = pneg %p154
        %p360 = pneg %p178
        %p361 = pneg %p175
        %p362 = pneg %p204
        %p363 = pneg %p201
        %s364 = sand.u32 %s191, 1
        %s365 = scalar_lea.sflag [#allocation4], %s364
        %s366 = sand.u32 %s191, 1
        %s367 = smul.addr %s366, 8
        %s368 = scalar_lea.vmem [#allocation10], %s367
        %p369 = pneg %p230
        %p370 = pneg %p227
        %s371 = sand.u32 %s217, 1
        %s372 = scalar_lea.sflag [#allocation12], %s371
        %s373 = sand.u32 %s217, 1
        %s374 = smul.addr %s373, 8
        %s375 = scalar_lea.vmem [#allocation11], %s374
        %v377 = vld [vmem:[%s326] sm:$0xff]
        %v378 = vpack.c.bf16 %v377, %v377
        %v379 = vld [vmem:[#allocation5] sm:$0xf]
        %v380 = vld [vmem:[#allocation5 + $0x4] sm:$0xf]
        %v381 = vld [vmem:[#allocation5 + $0x8] sm:$0xf]
        %v382 = vld [vmem:[#allocation5 + $0xc] sm:$0xf]
        %v383 = vld [vmem:[#allocation5 + $0x10] sm:$0xf]
        %v384 = vld [vmem:[#allocation5 + $0x14] sm:$0xf]
        %v385 = vld [vmem:[#allocation5 + $0x18] sm:$0xf]
        %v386 = vld [vmem:[#allocation5 + $0x1c] sm:$0xf]
        %v387 = vld [vmem:[#allocation5 + $0x20] sm:$0xf]
        %v388 = vld [vmem:[#allocation5 + $0x24] sm:$0xf]
        %v389 = vld [vmem:[#allocation5 + $0x28] sm:$0xf]
        %v390 = vld [vmem:[#allocation5 + $0x2c] sm:$0xf]
        %v391 = vld [vmem:[#allocation5 + $0x30] sm:$0xf]
        %v392 = vld [vmem:[#allocation5 + $0x34] sm:$0xf]
        %v393 = vld [vmem:[#allocation5 + $0x38] sm:$0xf]
        %v394 = vld [vmem:[#allocation5 + $0x3c] sm:$0xf]
        %v395 = vld [vmem:[%s2] sm:$0x1]
        %v397 = vlaneseq
        %v398 = vshrl.u32 %v397, 7
        %v399 = vsub.s32 0, %v398
        %v400 = vrot.slane %v395, %v399
        %v418 = vunpack.c.l.b16 %v379
        %v419 = vunpack.c.l.b16 %v380
        %v420 = vunpack.c.l.b16 %v381
        %v421 = vunpack.c.l.b16 %v382
        %v422 = vunpack.c.l.b16 %v383
        %v423 = vunpack.c.l.b16 %v384
        %v424 = vunpack.c.l.b16 %v385
        %v425 = vunpack.c.l.b16 %v386
        %v426 = vunpack.c.l.b16 %v387
        %v427 = vunpack.c.l.b16 %v388
        %v428 = vunpack.c.l.b16 %v389
        %v429 = vunpack.c.l.b16 %v390
        %v430 = vunpack.c.l.b16 %v391
        %v431 = vunpack.c.l.b16 %v392
        %v432 = vunpack.c.l.b16 %v393
        %v433 = vunpack.c.l.b16 %v394
        %v434 = vpack.c.b16 %v419, %v418
        %v435 = vpack.c.b16 %v421, %v420
        %v436 = vpack.c.b16 %v423, %v422
        %v437 = vpack.c.b16 %v425, %v424
        %v438 = vpack.c.b16 %v427, %v426
        %v439 = vpack.c.b16 %v429, %v428
        %v440 = vpack.c.b16 %v431, %v430
        %v441 = vpack.c.b16 %v433, %v432
        %450 = vmatprep.subr.bf16.mxu0 0
        %451 = vmatpush1.bf16.msra.mxu0 %v441
        %452 = vmatprep.subr.bf16.mxu0 0
        %453 = vmatpush1.bf16.msra.mxu0 %v440
        %454 = vmatprep.subr.bf16.mxu0 0
        %455 = vmatpush1.bf16.msra.mxu0 %v439
        %456 = vmatprep.subr.bf16.mxu0 0
        %457 = vmatpush1.bf16.msra.mxu0 %v438
        %458 = vmatprep.subr.bf16.mxu0 0
        %459 = vmatpush1.bf16.msra.mxu0 %v437
        %460 = vmatprep.subr.bf16.mxu0 0
        %461 = vmatpush1.bf16.msra.mxu0 %v436
        %462 = vmatprep.subr.bf16.mxu0 0
        %463 = vmatpush1.bf16.msra.mxu0 %v435
        %464 = vmatprep.subr.bf16.mxu0 0
        %465 = vmatpush1.bf16.msra.mxu0 %v434
        %466 = vmatprep.subr.bf16.mxu0 0
        %467 = vmatpush2.bf16.msra.mxu0 0
        %468 = vmatprep.subr.bf16.mxu0 0
        %469 = vmatpush2.bf16.msra.mxu0 0
        %470 = vmatprep.subr.bf16.mxu0 0
        %471 = vmatpush2.bf16.msra.mxu0 0
        %472 = vmatprep.subr.bf16.mxu0 0
        %473 = vmatpush2.bf16.msra.mxu0 0
        %474 = vmatprep.subr.bf16.mxu0 0
        %475 = vmatpush2.bf16.msra.mxu0 0
        %476 = vmatprep.subr.bf16.mxu0 0
        %477 = vmatpush2.bf16.msra.mxu0 0
        %478 = vmatprep.subr.bf16.mxu0 0
        %479 = vmatpush2.bf16.msra.mxu0 0
        %480 = vmatprep.subr.bf16.mxu0 0
        %481 = vmatpush2.bf16.msra.mxu0 0
        %482 = vmatprep.mubr.bf16.mxu0 0
        %483 = vmatmul.mubr.bf16.gmra.mxu0 %v378
        %v484 = vpop.f32.mrf.mxu0
        %v485 = vadd.f32 %v400, %v484
        %v486 = vpop.f32.mrf.mxu0
        %v487 = vpop.f32.mrf.mxu0
        %v488 = vpop.f32.mrf.mxu0
        %489 = vdwg.mxu0
        %v490 = vmax.f32 %v485, 0.0
        %v491 = vpack.c.bf16 %v490, %v490
        %v492 = vld [vmem:[#allocation7] sm:$0xf]
        %v493 = vld [vmem:[#allocation7 + $0x4] sm:$0xf]
        %v494 = vld [vmem:[#allocation7 + $0x8] sm:$0xf]
        %v495 = vld [vmem:[#allocation7 + $0xc] sm:$0xf]
        %v496 = vld [vmem:[#allocation7 + $0x10] sm:$0xf]
        %v497 = vld [vmem:[#allocation7 + $0x14] sm:$0xf]
        %v498 = vld [vmem:[#allocation7 + $0x18] sm:$0xf]
        %v499 = vld [vmem:[#allocation7 + $0x1c] sm:$0xf]
        %v500 = vld [vmem:[#allocation7 + $0x20] sm:$0xf]
        %v501 = vld [vmem:[#allocation7 + $0x24] sm:$0xf]
        %v502 = vld [vmem:[#allocation7 + $0x28] sm:$0xf]
        %v503 = vld [vmem:[#allocation7 + $0x2c] sm:$0xf]
        %v504 = vld [vmem:[#allocation7 + $0x30] sm:$0xf]
        %v505 = vld [vmem:[#allocation7 + $0x34] sm:$0xf]
        %v506 = vld [vmem:[#allocation7 + $0x38] sm:$0xf]
        %v507 = vld [vmem:[#allocation7 + $0x3c] sm:$0xf]
        %v508 = vld [vmem:[%s4] sm:$0x1]
        %v510 = vlaneseq
        %v511 = vshrl.u32 %v510, 7
        %v512 = vsub.s32 0, %v511
        %v513 = vrot.slane %v508, %v512
        %v531 = vunpack.c.l.b16 %v492
        %v532 = vunpack.c.l.b16 %v493
        %v533 = vunpack.c.l.b16 %v494
        %v534 = vunpack.c.l.b16 %v495
        %v535 = vunpack.c.l.b16 %v496
        %v536 = vunpack.c.l.b16 %v497
        %v537 = vunpack.c.l.b16 %v498
        %v538 = vunpack.c.l.b16 %v499
        %v539 = vunpack.c.l.b16 %v500
        %v540 = vunpack.c.l.b16 %v501
        %v541 = vunpack.c.l.b16 %v502
        %v542 = vunpack.c.l.b16 %v503
        %v543 = vunpack.c.l.b16 %v504
        %v544 = vunpack.c.l.b16 %v505
        %v545 = vunpack.c.l.b16 %v506
        %v546 = vunpack.c.l.b16 %v507
        %v547 = vpack.c.b16 %v532, %v531
        %v548 = vpack.c.b16 %v534, %v533
        %v549 = vpack.c.b16 %v536, %v535
        %v550 = vpack.c.b16 %v538, %v537
        %v551 = vpack.c.b16 %v540, %v539
        %v552 = vpack.c.b16 %v542, %v541
        %v553 = vpack.c.b16 %v544, %v543
        %v554 = vpack.c.b16 %v546, %v545
        %563 = vmatprep.subr.bf16.mxu0 0
        %564 = vmatpush1.bf16.msra.mxu0 %v554
        %565 = vmatprep.subr.bf16.mxu0 0
        %566 = vmatpush1.bf16.msra.mxu0 %v553
        %567 = vmatprep.subr.bf16.mxu0 0
        %568 = vmatpush1.bf16.msra.mxu0 %v552
        %569 = vmatprep.subr.bf16.mxu0 0
        %570 = vmatpush1.bf16.msra.mxu0 %v551
        %571 = vmatprep.subr.bf16.mxu0 0
        %572 = vmatpush1.bf16.msra.mxu0 %v550
        %573 = vmatprep.subr.bf16.mxu0 0
        %574 = vmatpush1.bf16.msra.mxu0 %v549
        %575 = vmatprep.subr.bf16.mxu0 0
        %576 = vmatpush1.bf16.msra.mxu0 %v548
        %577 = vmatprep.subr.bf16.mxu0 0
        %578 = vmatpush1.bf16.msra.mxu0 %v547
        %579 = vmatprep.subr.bf16.mxu0 0
        %580 = vmatpush2.bf16.msra.mxu0 0
        %581 = vmatprep.subr.bf16.mxu0 0
        %582 = vmatpush2.bf16.msra.mxu0 0
        %583 = vmatprep.subr.bf16.mxu0 0
        %584 = vmatpush2.bf16.msra.mxu0 0
        %585 = vmatprep.subr.bf16.mxu0 0
        %586 = vmatpush2.bf16.msra.mxu0 0
        %587 = vmatprep.subr.bf16.mxu0 0
        %588 = vmatpush2.bf16.msra.mxu0 0
        %589 = vmatprep.subr.bf16.mxu0 0
        %590 = vmatpush2.bf16.msra.mxu0 0
        %591 = vmatprep.subr.bf16.mxu0 0
        %592 = vmatpush2.bf16.msra.mxu0 0
        %593 = vmatprep.subr.bf16.mxu0 0
        %594 = vmatpush2.bf16.msra.mxu0 0
        %595 = vmatprep.mubr.bf16.mxu0 0
        %596 = vmatmul.mubr.bf16.gmra.mxu0 %v491
        %v597 = vpop.f32.mrf.mxu0
        %v598 = vadd.f32 %v513, %v597
        %v599 = vpop.f32.mrf.mxu0
        %v600 = vpop.f32.mrf.mxu0
        %v601 = vpop.f32.mrf.mxu0
        %602 = vdwg.mxu0
        %v603 = vmax.f32 %v598, 0.0
        %v604 = vpack.c.bf16 %v603, %v603
        %v605 = vld [vmem:[#allocation8] sm:$0xff]
        %v606 = vld [vmem:[#allocation8 + $0x8] sm:$0xff]
        %v607 = vld [vmem:[#allocation8 + $0x10] sm:$0xff]
        %v608 = vld [vmem:[#allocation8 + $0x18] sm:$0xff]
        %v609 = vld [vmem:[#allocation8 + $0x20] sm:$0xff]
        %v610 = vld [vmem:[#allocation8 + $0x28] sm:$0xff]
        %v611 = vld [vmem:[#allocation8 + $0x30] sm:$0xff]
        %v612 = vld [vmem:[#allocation8 + $0x38] sm:$0xff]
        %v613 = vld [vmem:[#allocation8 + $0x40] sm:$0xff]
        %v614 = vld [vmem:[#allocation8 + $0x48] sm:$0xff]
        %v615 = vld [vmem:[#allocation8 + $0x50] sm:$0xff]
        %v616 = vld [vmem:[#allocation8 + $0x58] sm:$0xff]
        %v617 = vld [vmem:[#allocation8 + $0x60] sm:$0xff]
        %v618 = vld [vmem:[#allocation8 + $0x68] sm:$0xff]
        %v619 = vld [vmem:[#allocation8 + $0x70] sm:$0xff]
        %v620 = vld [vmem:[#allocation8 + $0x78] sm:$0xff]
        %v621 = vld [vmem:[%s6] sm:$0x3]
        %v623 = vlaneseq
        %v624 = vshrl.u32 %v623, 7
        %v625 = vsub.s32 0, %v624
        %v626 = vrot.slane %v621, %v625
        %v627 = vlaneseq
        %v628 = vshrl.u32 %v627, 7
        %v629 = vsub.s32 1, %v628
        %v630 = vrot.slane %v621, %v629
        %v649 = vunpack.c.l.b16 %v605
        %v650 = vunpack.c.h.b16 %v605
        %v651 = vunpack.c.l.b16 %v606
        %v652 = vunpack.c.h.b16 %v606
        %v653 = vunpack.c.l.b16 %v607
        %v654 = vunpack.c.h.b16 %v607
        %v655 = vunpack.c.l.b16 %v608
        %v656 = vunpack.c.h.b16 %v608
        %v657 = vunpack.c.l.b16 %v609
        %v658 = vunpack.c.h.b16 %v609
        %v659 = vunpack.c.l.b16 %v610
        %v660 = vunpack.c.h.b16 %v610
        %v661 = vunpack.c.l.b16 %v611
        %v662 = vunpack.c.h.b16 %v611
        %v663 = vunpack.c.l.b16 %v612
        %v664 = vunpack.c.h.b16 %v612
        %v665 = vunpack.c.l.b16 %v613
        %v666 = vunpack.c.h.b16 %v613
        %v667 = vunpack.c.l.b16 %v614
        %v668 = vunpack.c.h.b16 %v614
        %v669 = vunpack.c.l.b16 %v615
        %v670 = vunpack.c.h.b16 %v615
        %v671 = vunpack.c.l.b16 %v616
        %v672 = vunpack.c.h.b16 %v616
        %v673 = vunpack.c.l.b16 %v617
        %v674 = vunpack.c.h.b16 %v617
        %v675 = vunpack.c.l.b16 %v618
        %v676 = vunpack.c.h.b16 %v618
        %v677 = vunpack.c.l.b16 %v619
        %v678 = vunpack.c.h.b16 %v619
        %v679 = vunpack.c.l.b16 %v620
        %v680 = vunpack.c.h.b16 %v620
        %v681 = vpack.c.b16 %v651, %v649
        %v682 = vpack.c.b16 %v652, %v650
        %v683 = vpack.c.b16 %v655, %v653
        %v684 = vpack.c.b16 %v656, %v654
        %v685 = vpack.c.b16 %v659, %v657
        %v686 = vpack.c.b16 %v660, %v658
        %v687 = vpack.c.b16 %v663, %v661
        %v688 = vpack.c.b16 %v664, %v662
        %v689 = vpack.c.b16 %v667, %v665
        %v690 = vpack.c.b16 %v668, %v666
        %v691 = vpack.c.b16 %v671, %v669
        %v692 = vpack.c.b16 %v672, %v670
        %v693 = vpack.c.b16 %v675, %v673
        %v694 = vpack.c.b16 %v676, %v674
        %v695 = vpack.c.b16 %v679, %v677
        %v696 = vpack.c.b16 %v680, %v678
        %713 = vmatprep.subr.bf16.mxu0 %v696
        %714 = vmatpush1.bf16.msra.mxu0 %v695
        %715 = vmatprep.subr.bf16.mxu0 %v694
        %716 = vmatpush1.bf16.msra.mxu0 %v693
        %717 = vmatprep.subr.bf16.mxu0 %v692
        %718 = vmatpush1.bf16.msra.mxu0 %v691
        %719 = vmatprep.subr.bf16.mxu0 %v690
        %720 = vmatpush1.bf16.msra.mxu0 %v689
        %721 = vmatprep.subr.bf16.mxu0 %v688
        %722 = vmatpush1.bf16.msra.mxu0 %v687
        %723 = vmatprep.subr.bf16.mxu0 %v686
        %724 = vmatpush1.bf16.msra.mxu0 %v685
        %725 = vmatprep.subr.bf16.mxu0 %v684
        %726 = vmatpush1.bf16.msra.mxu0 %v683
        %727 = vmatprep.subr.bf16.mxu0 %v682
        %728 = vmatpush1.bf16.msra.mxu0 %v681
        %729 = vmatprep.subr.bf16.mxu0 0
        %730 = vmatpush2.bf16.msra.mxu0 0
        %731 = vmatprep.subr.bf16.mxu0 0
        %732 = vmatpush2.bf16.msra.mxu0 0
        %733 = vmatprep.subr.bf16.mxu0 0
        %734 = vmatpush2.bf16.msra.mxu0 0
        %735 = vmatprep.subr.bf16.mxu0 0
        %736 = vmatpush2.bf16.msra.mxu0 0
        %737 = vmatprep.subr.bf16.mxu0 0
        %738 = vmatpush2.bf16.msra.mxu0 0
        %739 = vmatprep.subr.bf16.mxu0 0
        %740 = vmatpush2.bf16.msra.mxu0 0
        %741 = vmatprep.subr.bf16.mxu0 0
        %742 = vmatpush2.bf16.msra.mxu0 0
        %743 = vmatprep.subr.bf16.mxu0 0
        %744 = vmatpush2.bf16.msra.mxu0 0
        %745 = vmatprep.mubr.bf16.mxu0 0
        %746 = vmatmul.mubr.bf16.gmra.mxu0 %v604
        %v747 = vpop.f32.mrf.mxu0
        %v748 = vadd.f32 %v626, %v747
        %v749 = vpop.f32.mrf.mxu0
        %v750 = vadd.f32 %v630, %v749
        %v751 = vpop.f32.mrf.mxu0
        %v752 = vpop.f32.mrf.mxu0
        %753 = vdwg.mxu0
        %v754 = vsub.f32 %v377, %v748
        %v755 = vsub.f32 0.0, %v750
        %v756 = vmul.f32 %v755, 1.442695
        %v757 = vpow.pop %v756
        %v758 = vmul.f32 %v754, %v757
        %759 = vst [vmem:[%s368] sm:$0xff] %v758
        %760 = vadd.xlane.f32.xlu0 %v750
        %v761 = vpop.xlane.xlu0 %760
        %v762 = vsub.f32 0.0, %v761
        %763 = vst [vmem:[%s375] sm:$0xff] %v762
        %s764 = sand.u32 %s191, 1
        %s765 = scalar_lea.sflag [#allocation4], %s764
        %s766 = sand.u32 %s191, 1
        %s767 = smul.addr %s766, 8
        %s768 = scalar_lea.vmem [#allocation10], %s767
        %s769 = sand.u32 %s217, 1
        %s770 = scalar_lea.sflag [#allocation12], %s769
        %s771 = sand.u32 %s217, 1
        %s772 = smul.addr %s771, 8
        %s773 = scalar_lea.vmem [#allocation11], %s772
        // Predicated region
        $region65: #{tpu_custom_call.1} parent=47 // pred_check
          %p774 = pneg %p201
        $region66: #{tpu_custom_call.1} parent=47 // pred_check_branch
          %776 = sbr.rel (%p774) target = $region68
        $region67: #{tpu_custom_call.1} parent=47 // pred_region
          %s778 = ssub.s32 128, 128
          %779 = vsyncadd %s765, %s778
          %s780 = smul.addr %s31, 128
          %s781 = scalar_lea.hbm %s7, %s780
          %s783 = sshll.u32 %s768, 4
          %s784 = int_to_ptr.vmem [resolvable:$true] %s783
          %786 = dma.vmem_to_hbm [thread:$0]  %s784, 128, %s781, %s765
        $region68: #{tpu_custom_call.1} parent=47 // pred_fallthru
          _
        // Predicated region
        $region69: #{tpu_custom_call.1} parent=47 // pred_check
          %p787 = pneg %p227
        $region70: #{tpu_custom_call.1} parent=47 // pred_check_branch
          %789 = sbr.rel (%p787) target = $region72
        $region71: #{tpu_custom_call.1} parent=47 // pred_region
          %s791 = ssub.s32 128, 128
          %792 = vsyncadd %s770, %s791
          %s793 = smul.addr %s31, 128
          %s794 = scalar_lea.hbm %s8, %s793
          %s796 = sshll.u32 %s773, 4
          %s797 = int_to_ptr.vmem [resolvable:$true] %s796
          %799 = dma.vmem_to_hbm [thread:$0]  %s797, 128, %s794, %s770
        $region72: #{tpu_custom_call.1} parent=47 // pred_fallthru
          _
      $region48: #{tpu_custom_call.1} parent=5 // pred_fallthru
        _
      %p800 = scmp.le.s32.totalorder 2, %s26
      // Predicated region
      $region73: #{tpu_custom_call.1} parent=5 // pred_check
        %p801 = pneg %p800
      $region74: #{tpu_custom_call.1} parent=5 // pred_check_branch
        %803 = sbr.rel (%p801) target = $region76
      $region75: #{tpu_custom_call.1} parent=5 // pred_region
        %s804 = ssub.s32 %s26, 2
        // Predicated region
        $region77: #{tpu_custom_call.1} parent=75 // pred_check
          %p805 = pneg %p207
        $region78: #{tpu_custom_call.1} parent=75 // pred_check_branch
          %807 = sbr.rel (%p805) target = $region80
        $region79: #{tpu_custom_call.1} parent=75 // pred_region
          %s808 = sand.u32 %s192, 1
          %s809 = scalar_lea.sflag [#allocation4], %s808
          %s810 = sand.u32 %s192, 1
          %s811 = smul.addr %s810, 8
          %s812 = scalar_lea.vmem [#allocation10], %s811
          %813 = dma.done %s809, 128
        $region80: #{tpu_custom_call.1} parent=75 // pred_fallthru
          _
        // Predicated region
        $region81: #{tpu_custom_call.1} parent=75 // pred_check
          %p814 = pneg %p233
        $region82: #{tpu_custom_call.1} parent=75 // pred_check_branch
          %816 = sbr.rel (%p814) target = $region84
        $region83: #{tpu_custom_call.1} parent=75 // pred_region
          %s817 = sand.u32 %s218, 1
          %s818 = scalar_lea.sflag [#allocation12], %s817
          %s819 = sand.u32 %s218, 1
          %s820 = smul.addr %s819, 8
          %s821 = scalar_lea.vmem [#allocation11], %s820
          %822 = dma.done %s818, 128
        $region84: #{tpu_custom_call.1} parent=75 // pred_fallthru
          _
      $region76: #{tpu_custom_call.1} parent=5 // pred_fallthru
        _
    $region6: #{tpu_custom_call.1} parent=1 // loop_footer
      %s30 = sadd.s32 1, %s26
    $region7: #{tpu_custom_call.1} parent=1 // loop_footer_branch
      %25 = sbr.rel target = $region3
    $region8: #{tpu_custom_call.1} parent=1 // loop_exit
      _
    %823 = vsyncpa [#allocation3], 1
    %s824 = scalar_lea.sflag [#allocation3], 1
    %825 = vsyncpa %s824, 1
    %826 = vsyncpa [#allocation6], 1
    %827 = vsyncpa [#allocation9], 1
    %828 = vsyncpa [#allocation4], 1
    %s829 = scalar_lea.sflag [#allocation4], 1
    %830 = vsyncpa %s829, 1
    %831 = vsyncpa [#allocation12], 1
    %s832 = scalar_lea.sflag [#allocation12], 1
    %833 = vsyncpa %s832, 1

</llo_original>
